<compile_context>
chip_gen: v7x
topology: tpu7x:2x2x1
jax: 0.10.0
libtpu: 0.0.40
codegen_flags: <defaults>
</compile_context>

<pallas_src>
import functools
import math

import jax
import jax.numpy as jnp
from jax import lax
from jax.experimental import pallas as pl
from jax.experimental.pallas import tpu as pltpu


# ----------------------------------------------------------------------------
# Kernel
# ----------------------------------------------------------------------------
def _graformer_mha_kernel(x_ref, qc_ref, pb_ref, gs_ref, omega_ref,
                          wq_ref, bq_ref, wk_ref, bk_ref, wv_ref, bv_ref,
                          wo_ref, bo_ref,
                          *rest,
                          n_heads, d_k, d_v, tq, emit_attn):
    # grid = (batch, query_tile); rest = out refs then scratch refs.
    if emit_attn:
        out_ref, attn_ref, score_ref, ema_s, k_s, v_s, ctx_s = rest
    else:
        out_ref, ema_s, k_s, v_s, ctx_s = rest
        attn_ref = score_ref = None

    qi = pl.program_id(1)
    L = x_ref.shape[1]
    cdt = x_ref.dtype                       # MXU operand dtype (= module dtype)

    # ---- once per batch element (qi == 0): EMA scan + K / V projections ----
    @pl.when(qi == 0)
    def _():
        qc = qc_ref[...]                    # (ndim, D) decay      1 - p*sig(alpha)
        pb = pb_ref[...]                    # (ndim, D) input coef p*beta
        gs = gs_ref[...]                    # (ndim, D) gamma * sqrt(1/ndim)

        def ema_step(t, h):
            xt = x_ref[0, pl.ds(t, 1), :].astype(jnp.float32)      # (1, D)
            h = qc * h + pb * xt                                    # (ndim, D)
            ema_s[pl.ds(t, 1), :] = jnp.sum(gs * h, axis=0, keepdims=True)
            return h

        lax.fori_loop(0, L, ema_step, jnp.zeros_like(qc))

        x32 = x_ref[0].astype(jnp.float32)                          # (L, D)
        act = ema_s[...] + x32 * omega_ref[...].astype(jnp.float32)
        act = act * jax.nn.sigmoid(act)                             # SiLU
        ema_s[...] = act                                            # Q/K source (f32)

        k_s[...] = (jnp.dot(act.astype(cdt), wk_ref[...],
                            preferred_element_type=jnp.float32)
                    + bk_ref[...].astype(jnp.float32))
        v_s[...] = (jnp.dot(x_ref[0], wv_ref[...],
                            preferred_element_type=jnp.float32)
                    + bv_ref[...].astype(jnp.float32))

    # ---- per query tile: q projection, per-head attention, fused out-proj --
    row0 = pl.multiple_of(qi * tq, tq)
    q_in = ema_s[pl.ds(row0, tq), :].astype(cdt)                    # (tq, D)
    # W_Q / b_Q are pre-scaled by head_dim**-0.5 in the wrapper.
    q_all = (jnp.dot(q_in, wq_ref[...], preferred_element_type=jnp.float32)
             + bq_ref[...].astype(jnp.float32))                     # (tq, H*d_k)
    k_all = k_s[...]                                                # (L, H*d_k)
    v_all = v_s[...]                                                # (L, H*d_v)

    for h in range(n_heads):
        qh = q_all[:, h * d_k:(h + 1) * d_k]                        # (tq, d_k)
        kh = k_all[:, h * d_k:(h + 1) * d_k]                        # (L,  d_k)
        s = lax.dot_general(qh, kh, (((1,), (1,)), ((), ())),
                            preferred_element_type=jnp.float32)     # (tq, L)
        m = jnp.max(s, axis=-1, keepdims=True)
        e = jnp.exp(s - m)
        p = e * pl.reciprocal(jnp.sum(e, axis=-1, keepdims=True), approx=True)
        if emit_attn:
            score_ref[0, h] = s.astype(score_ref.dtype)
            attn_ref[0, h] = p.astype(attn_ref.dtype)               # attn_dropout=id
        ctx_s[:, h * d_v:(h + 1) * d_v] = jnp.dot(
            p, v_all[:, h * d_v:(h + 1) * d_v],
            preferred_element_type=jnp.float32)                     # (tq, d_v)

    # single full-contraction output projection (fused across heads)
    out = (jnp.dot(ctx_s[...].astype(cdt), wo_ref[...],
                   preferred_element_type=jnp.float32)
           + bo_ref[...].astype(jnp.float32))                       # proj_dropout=id
    out_ref[0] = out.astype(out_ref.dtype)


# ----------------------------------------------------------------------------
# Wrapper
# ----------------------------------------------------------------------------
def _pick_query_tile(seq_len):
    """Query-tile size: full sequence for short L, 128/256-row tiles for long L."""
    if seq_len <= 256:
        return seq_len
    for t in (256, 128, 64, 32, 16, 8):
        if seq_len % t == 0:
            return t
    return seq_len


def _vmem_limit_bytes():
    # ~100 MiB on v5e/v6e (128 MiB physical); leave headroom on v7x (64 MiB).
    try:
        cap = pltpu.get_tpu_info().vmem_capacity_bytes
    except Exception:
        cap = 64 * 1024 * 1024
    return min(int(cap * 0.8), 100 * 1024 * 1024)


@functools.partial(jax.jit, static_argnames=("n_heads", "emit_attn"))
def graformer_mha(x, params, n_heads, emit_attn=True):
    """x: (B, L, d_model) -> (output, attn_weights, attn_scores, weight_u)."""
    B, L, D = x.shape
    assert D % n_heads == 0
    d_k = d_v = D // n_heads
    ndim = params["delta"].shape[1]
    attn_scale = float(d_k) ** -0.5
    ema_scale = math.sqrt(1.0 / ndim)

    # low-rank EMA coefficients (O(ndim*D); replaces the old (L,L,D) Toeplitz)
    p = jax.nn.sigmoid(params["delta"][..., 0].astype(jnp.float32))       # (D, ndim)
    a = jax.nn.sigmoid(params["alpha"][..., 0].astype(jnp.float32))       # (D, ndim)
    qc = jnp.transpose(1.0 - p * a)                                       # (ndim, D)
    pb = jnp.transpose(p * params["beta"][..., 0].astype(jnp.float32))    # (ndim, D)
    gs = jnp.transpose(params["gamma"].astype(jnp.float32) * ema_scale)   # (ndim, D)

    # fold the score scale into W_Q / b_Q:  ((q*s) @ k^T) == (q @ k^T) * s
    wq = params["wq"] * attn_scale
    bq = params["bq"] * attn_scale

    tq = _pick_query_tile(L)
    n_q = L // tq
    Hk, Hv = n_heads * d_k, n_heads * d_v

    kernel = functools.partial(_graformer_mha_kernel, n_heads=n_heads,
                               d_k=d_k, d_v=d_v, tq=tq, emit_attn=emit_attn)

    full2 = lambda b, qi: (0, 0)
    in_specs = [
        pl.BlockSpec((1, L, D), lambda b, qi: (b, 0, 0)),      # x
        pl.BlockSpec((ndim, D), full2),                        # EMA decay q
        pl.BlockSpec((ndim, D), full2),                        # EMA p*beta
        pl.BlockSpec((ndim, D), full2),                        # EMA gamma*scale
        pl.BlockSpec((1, D), full2),                           # omega
        pl.BlockSpec((D, Hk), full2),                          # W_Q (pre-scaled)
        pl.BlockSpec((1, Hk), full2),                          # b_Q (pre-scaled)
        pl.BlockSpec((D, Hk), full2),                          # W_K
        pl.BlockSpec((1, Hk), full2),                          # b_K
        pl.BlockSpec((D, Hv), full2),                          # W_V
        pl.BlockSpec((1, Hv), full2),                          # b_V
        pl.BlockSpec((Hv, D), full2),                          # W_O
        pl.BlockSpec((1, D), full2),                           # b_O
    ]

    out_spec_o = pl.BlockSpec((1, tq, D), lambda b, qi: (b, qi, 0))
    if emit_attn:
        out_shape = (jax.ShapeDtypeStruct((B, L, D), x.dtype),
                     jax.ShapeDtypeStruct((B, n_heads, L, L), x.dtype),
                     jax.ShapeDtypeStruct((B, n_heads, L, L), x.dtype))
        out_specs = (out_spec_o,
                     pl.BlockSpec((1, n_heads, tq, L), lambda b, qi: (b, 0, qi, 0)),
                     pl.BlockSpec((1, n_heads, tq, L), lambda b, qi: (b, 0, qi, 0)))
    else:
        out_shape = jax.ShapeDtypeStruct((B, L, D), x.dtype)
        out_specs = out_spec_o

    scratch_shapes = [
        pltpu.VMEM((L, D), jnp.float32),     # EMA conv -> post-SiLU Q/K source
        pltpu.VMEM((L, Hk), jnp.float32),    # K projection (all heads)
        pltpu.VMEM((L, Hv), jnp.float32),    # V projection (all heads)
        pltpu.VMEM((tq, Hv), jnp.float32),   # per-tile head contexts (fused W_O)
    ]

    itemsize = jnp.dtype(x.dtype).itemsize
    flops = B * (2 * L * D * (2 * Hk + 2 * Hv)           # q/k/v + output proj
                 + 2 * L * L * (Hk + Hv)                 # scores + context
                 + 5 * L * D * ndim)                     # EMA scan
    transcendentals = B * (n_heads * L * L + L * D + n_heads * L)
    bytes_accessed = itemsize * (2 * B * L * D
                                 + (2 * B * n_heads * L * L if emit_attn else 0)
                                 + 2 * D * Hk + 2 * D * Hv + 2 * (Hk + Hv + 2 * D))

    results = pl.pallas_call(
        kernel,
        out_shape=out_shape,
        grid_spec=pltpu.PrefetchScalarGridSpec(
            num_scalar_prefetch=0,
            grid=(B, n_q),
            in_specs=in_specs,
            out_specs=out_specs,
            scratch_shapes=scratch_shapes),
        compiler_params=pltpu.CompilerParams(
            dimension_semantics=("parallel", "arbitrary"),
            vmem_limit_bytes=_vmem_limit_bytes()),
        cost_estimate=pl.CostEstimate(flops=flops,
                                      transcendentals=transcendentals,
                                      bytes_accessed=bytes_accessed),
    )(x, qc, pb, gs, params["omega"], wq, bq, params["wk"], params["bk"],
      params["wv"], params["bv"], params["wo"], params["bo"])

    weight_u = jnp.zeros((1,), x.dtype)      # torch returns torch.zeros([1])
    if emit_attn:
        out, attn_w, attn_s = results
    else:
        out, attn_w, attn_s = results, None, None
    return out, attn_w, attn_s, weight_u


# ----------------------------------------------------------------------------
# Parameter init (mimics the PyTorch module's reset_parameters / Linear init)
# ----------------------------------------------------------------------------
def init_params(key, d_model, n_heads, ndim=2, dtype=jnp.float32):
    d_k = d_v = d_model // n_heads
    ks = jax.random.split(key, 13)
    delta = 0.2 * jax.random.normal(ks[0], (d_model, ndim, 1), jnp.float32)
    alpha = 0.2 * jax.random.normal(ks[1], (d_model, ndim, 1), jnp.float32)
    val = jnp.array([1.0 if i % 2 == 0 else -1.0 for i in range(ndim)],
                    jnp.float32).reshape(ndim, 1)
    beta = 0.02 * jax.random.normal(ks[2], (d_model, ndim, 1), jnp.float32) + val
    gamma = jax.random.normal(ks[3], (d_model, ndim), jnp.float32)
    omega = jax.random.normal(ks[4], (1, d_model), jnp.float32)

    def linear(kw, kb, fan_in, fan_out):
        bound = 1.0 / math.sqrt(fan_in)
        w = jax.random.uniform(kw, (fan_in, fan_out), dtype, -bound, bound)
        b = jax.random.uniform(kb, (1, fan_out), dtype, -bound, bound)
        return w, b

    wq, bq = linear(ks[5], ks[6], d_model, n_heads * d_k)
    wk, bk = linear(ks[7], ks[8], d_model, n_heads * d_k)
    wv, bv = linear(ks[9], ks[10], d_model, n_heads * d_v)
    wo, bo = linear(ks[11], ks[12], n_heads * d_v, d_model)
    return dict(delta=delta, alpha=alpha, beta=beta, gamma=gamma, omega=omega,
                wq=wq, bq=bq, wk=wk, bk=bk, wv=wv, bv=bv, wo=wo, bo=bo)


# ----------------------------------------------------------------------------
# Pure-JAX reference (FFT-based EMA conv, exactly like the torch forward)
# ----------------------------------------------------------------------------
def reference_forward(x, params, n_heads):
    B, L, D = x.shape
    d_k = d_v = D // n_heads
    ndim = params["delta"].shape[1]
    ema_scale = math.sqrt(1.0 / ndim)

    p = jax.nn.sigmoid(params["delta"].astype(jnp.float32))
    q = 1.0 - p * jax.nn.sigmoid(params["alpha"].astype(jnp.float32))
    vander = jnp.arange(L, dtype=jnp.float32)[None, None, :] * jnp.log(q)
    kern = p * params["beta"].astype(jnp.float32) * jnp.exp(vander)
    kvec = jnp.einsum("dnl,dn->dl", kern,
                      params["gamma"].astype(jnp.float32) * ema_scale)

    nfft = 2 * L
    kf = jnp.fft.rfft(kvec, n=nfft)
    xt = jnp.transpose(x, (0, 2, 1)).astype(jnp.float32)
    xf = jnp.fft.rfft(xt, n=nfft)
    conv = jnp.fft.irfft(xf * kf[None], n=nfft)[..., :L]
    ema = jax.nn.silu(jnp.transpose(conv, (0, 2, 1)) + x * params["omega"][None])

    qp = ema @ params["wq"] + params["bq"]
    kp = ema @ params["wk"] + params["bk"]
    vp = x @ params["wv"] + params["bv"]

    def split(t, dh):
        return t.reshape(B, L, n_heads, dh).transpose(0, 2, 1, 3)

    qh, kh, vh = split(qp, d_k), split(kp, d_k), split(vp, d_v)
    scale = float(d_k) ** -0.5
    scores = jnp.einsum("bhqd,bhkd->bhqk", qh, kh) * scale
    weights = jax.nn.softmax(scores, axis=-1)
    ctx = jnp.einsum("bhqk,bhkd->bhqd", weights, vh)
    ctx = ctx.transpose(0, 2, 1, 3).reshape(B, L, n_heads * d_v)
    out = ctx @ params["wo"] + params["bo"]
    return out, weights, scores


if __name__ == "__main__":
    B, L, D, NH = 2, 8, 16, 4
    key = jax.random.PRNGKey(0)
    kx, kp = jax.random.split(key)
    x = jax.random.normal(kx, (B, L, D), jnp.float32)
    params = init_params(kp, D, NH)

    out, attn_w, attn_s, weight_u = graformer_mha(x, params, n_heads=NH)
    out = jax.block_until_ready(out)

    ref_out, ref_w, ref_s = reference_forward(x, params, NH)
    assert out.shape == (B, L, D)
    assert attn_w.shape == (B, NH, L, L) and attn_s.shape == (B, NH, L, L)
    err_o = float(jnp.max(jnp.abs(out - ref_out)))
    err_w = float(jnp.max(jnp.abs(attn_w - ref_w)))
    err_s = float(jnp.max(jnp.abs(attn_s - ref_s)))
    # tolerance accommodates MXU pass differences + approx-reciprocal softmax
    assert err_o < 2e-2 and err_w < 2e-2 and err_s < 2e-2, (err_o, err_w, err_s)

    print("KERNEL_OK")
</pallas_src>

<mosaic_0001>
module attributes {stable_mosaic.version = 11 : i64} {
  func.func @_graformer_mha_kernel(%arg0: i32, %arg1: i32, %arg2: memref<1x8x16xf32, #tpu.memory_space<vmem>>, %arg3: memref<2x16xf32, #tpu.memory_space<vmem>>, %arg4: memref<2x16xf32, #tpu.memory_space<vmem>>, %arg5: memref<2x16xf32, #tpu.memory_space<vmem>>, %arg6: memref<1x16xf32, #tpu.memory_space<vmem>>, %arg7: memref<16x16xf32, #tpu.memory_space<vmem>>, %arg8: memref<1x16xf32, #tpu.memory_space<vmem>>, %arg9: memref<16x16xf32, #tpu.memory_space<vmem>>, %arg10: memref<1x16xf32, #tpu.memory_space<vmem>>, %arg11: memref<16x16xf32, #tpu.memory_space<vmem>>, %arg12: memref<1x16xf32, #tpu.memory_space<vmem>>, %arg13: memref<16x16xf32, #tpu.memory_space<vmem>>, %arg14: memref<1x16xf32, #tpu.memory_space<vmem>>, %arg15: memref<1x8x16xf32, #tpu.memory_space<vmem>>, %arg16: memref<1x4x8x8xf32, #tpu.memory_space<vmem>>, %arg17: memref<1x4x8x8xf32, #tpu.memory_space<vmem>>, %arg18: memref<8x16xf32, #tpu.memory_space<vmem>>, %arg19: memref<8x16xf32, #tpu.memory_space<vmem>>, %arg20: memref<8x16xf32, #tpu.memory_space<vmem>>, %arg21: memref<8x16xf32, #tpu.memory_space<vmem>>) attributes {dimension_semantics = [#tpu.dimension_semantics<parallel>, #tpu.dimension_semantics<arbitrary>], iteration_bounds = array<i64: 2, 1>, scalar_prefetch = 0 : i64, scratch_operands = 4 : i64, tpu.core_type = #tpu.core_type<tc>, window_params = [{transform_indices = @transform_0, window_bounds = array<i64: 1, 8, 16>}, {pipeline_mode = #tpu.pipeline_mode<synchronous>, transform_indices = @transform_1, window_bounds = array<i64: 2, 16>}, {pipeline_mode = #tpu.pipeline_mode<synchronous>, transform_indices = @transform_2, window_bounds = array<i64: 2, 16>}, {pipeline_mode = #tpu.pipeline_mode<synchronous>, transform_indices = @transform_3, window_bounds = array<i64: 2, 16>}, {pipeline_mode = #tpu.pipeline_mode<synchronous>, transform_indices = @transform_4, window_bounds = array<i64: 1, 16>}, {pipeline_mode = #tpu.pipeline_mode<synchronous>, transform_indices = @transform_5, window_bounds = array<i64: 16, 16>}, {pipeline_mode = #tpu.pipeline_mode<synchronous>, transform_indices = @transform_6, window_bounds = array<i64: 1, 16>}, {pipeline_mode = #tpu.pipeline_mode<synchronous>, transform_indices = @transform_7, window_bounds = array<i64: 16, 16>}, {pipeline_mode = #tpu.pipeline_mode<synchronous>, transform_indices = @transform_8, window_bounds = array<i64: 1, 16>}, {pipeline_mode = #tpu.pipeline_mode<synchronous>, transform_indices = @transform_9, window_bounds = array<i64: 16, 16>}, {pipeline_mode = #tpu.pipeline_mode<synchronous>, transform_indices = @transform_10, window_bounds = array<i64: 1, 16>}, {pipeline_mode = #tpu.pipeline_mode<synchronous>, transform_indices = @transform_11, window_bounds = array<i64: 16, 16>}, {pipeline_mode = #tpu.pipeline_mode<synchronous>, transform_indices = @transform_12, window_bounds = array<i64: 1, 16>}, {transform_indices = @transform_13, window_bounds = array<i64: 1, 8, 16>}, {transform_indices = @transform_14, window_bounds = array<i64: 1, 4, 8, 8>}, {transform_indices = @transform_15, window_bounds = array<i64: 1, 4, 8, 8>}]} {
    %c0_i32 = arith.constant 0 : i32
    %0 = arith.cmpi eq, %arg1, %c0_i32 : i32
    %1 = arith.extui %0 : i1 to i32
    %c0_i32_0 = arith.constant 0 : i32
    %2 = arith.cmpi ne, %1, %c0_i32_0 : i32
    scf.if %2 {
      %c0_69 = arith.constant 0 : index
      %c0_70 = arith.constant 0 : index
      %111 = vector.load %arg3[%c0_69, %c0_70] : memref<2x16xf32, #tpu.memory_space<vmem>>, vector<2x16xf32>
      %c0_71 = arith.constant 0 : index
      %c0_72 = arith.constant 0 : index
      %112 = vector.load %arg4[%c0_71, %c0_72] : memref<2x16xf32, #tpu.memory_space<vmem>>, vector<2x16xf32>
      %c0_73 = arith.constant 0 : index
      %c0_74 = arith.constant 0 : index
      %113 = vector.load %arg5[%c0_73, %c0_74] : memref<2x16xf32, #tpu.memory_space<vmem>>, vector<2x16xf32>
      %cst_75 = arith.constant 0.000000e+00 : f32
      %114 = vector.broadcast %cst_75 : f32 to vector<2x16xf32>
      %c0_i32_76 = arith.constant 0 : i32
      %c8_i32_77 = arith.constant 8 : i32
      %115 = arith.addi %c0_i32_76, %c8_i32_77 : i32
      %c1_i32 = arith.constant 1 : i32
      %116 = scf.for %arg22 = %c0_i32_76 to %115 step %c1_i32 iter_args(%arg23 = %114) -> (vector<2x16xf32>)  : i32 {
        %c0_106 = arith.constant 0 : index
        %145 = arith.index_cast %arg22 : i32 to index
        %c0_107 = arith.constant 0 : index
        %146 = vector.load %arg2[%c0_106, %145, %c0_107] : memref<1x8x16xf32, #tpu.memory_space<vmem>>, vector<1x1x16xf32>
        %147 = vector.shape_cast %146 : vector<1x1x16xf32> to vector<1x16xf32>
        %148 = arith.mulf %111, %arg23 : vector<2x16xf32>
        %149 = vector.broadcast %147 : vector<1x16xf32> to vector<2x16xf32>
        %150 = arith.mulf %112, %149 : vector<2x16xf32>
        %151 = arith.addf %148, %150 : vector<2x16xf32>
        %152 = arith.mulf %113, %151 : vector<2x16xf32>
        %cst_108 = arith.constant dense<0.000000e+00> : vector<16xf32>
        %153 = vector.multi_reduction <add>, %152, %cst_108 [0] : vector<2x16xf32> to vector<16xf32>
        %154 = vector.shape_cast %153 : vector<16xf32> to vector<1x16xf32>
        %155 = arith.index_cast %arg22 : i32 to index
        %c0_109 = arith.constant 0 : index
        %156 = vector.load %arg18[%155, %c0_109] : memref<8x16xf32, #tpu.memory_space<vmem>>, vector<1x16xf32>
        tpu.vector_store %arg18[%155, %c0_109], %154 {strides = array<i32>} : memref<8x16xf32, #tpu.memory_space<vmem>>, vector<1x16xf32>,
        scf.yield %151 : vector<2x16xf32>
      }
      %c8_i32_78 = arith.constant 8 : i32
      %c0_79 = arith.constant 0 : index
      %c0_80 = arith.constant 0 : index
      %c0_81 = arith.constant 0 : index
      %117 = vector.load %arg2[%c0_79, %c0_80, %c0_81] : memref<1x8x16xf32, #tpu.memory_space<vmem>>, vector<1x8x16xf32>
      %118 = vector.shape_cast %117 : vector<1x8x16xf32> to vector<8x16xf32>
      %c0_82 = arith.constant 0 : index
      %c0_83 = arith.constant 0 : index
      %119 = vector.load %arg18[%c0_82, %c0_83] : memref<8x16xf32, #tpu.memory_space<vmem>>, vector<8x16xf32>
      %c0_84 = arith.constant 0 : index
      %c0_85 = arith.constant 0 : index
      %120 = vector.load %arg6[%c0_84, %c0_85] : memref<1x16xf32, #tpu.memory_space<vmem>>, vector<1x16xf32>
      %121 = vector.broadcast %120 : vector<1x16xf32> to vector<8x16xf32>
      %122 = arith.mulf %118, %121 : vector<8x16xf32>
      %123 = arith.addf %119, %122 : vector<8x16xf32>
      %124 = arith.negf %123 : vector<8x16xf32>
      %125 = math.exp %124 : vector<8x16xf32>
      %cst_86 = arith.constant 1.000000e+00 : f32
      %126 = vector.broadcast %cst_86 : f32 to vector<8x16xf32>
      %127 = arith.addf %126, %125 : vector<8x16xf32>
      %128 = arith.divf %126, %127 : vector<8x16xf32>
      %129 = arith.mulf %123, %128 : vector<8x16xf32>
      %c0_87 = arith.constant 0 : index
      %c0_88 = arith.constant 0 : index
      %130 = vector.load %arg18[%c0_87, %c0_88] : memref<8x16xf32, #tpu.memory_space<vmem>>, vector<8x16xf32>
      tpu.vector_store %arg18[%c0_87, %c0_88], %129 {strides = array<i32>} : memref<8x16xf32, #tpu.memory_space<vmem>>, vector<8x16xf32>,
      %c0_89 = arith.constant 0 : index
      %c0_90 = arith.constant 0 : index
      %131 = vector.load %arg9[%c0_89, %c0_90] : memref<16x16xf32, #tpu.memory_space<vmem>>, vector<16x16xf32>
      %cst_91 = arith.constant dense<0.000000e+00> : vector<8x16xf32>
      %132 = tpu.matmul %129, %131, %cst_91 {dimension_numbers = #tpu.dot_dimension_numbers<[1], [0], [0], [1], [0, 0, 1, 1], [], []>} : vector<8x16xf32>, vector<16x16xf32>, vector<8x16xf32> -> vector<8x16xf32>
      %c0_92 = arith.constant 0 : index
      %c0_93 = arith.constant 0 : index
      %133 = vector.load %arg10[%c0_92, %c0_93] : memref<1x16xf32, #tpu.memory_space<vmem>>, vector<1x16xf32>
      %134 = vector.broadcast %133 : vector<1x16xf32> to vector<8x16xf32>
      %135 = arith.addf %132, %134 : vector<8x16xf32>
      %c0_94 = arith.constant 0 : index
      %c0_95 = arith.constant 0 : index
      %136 = vector.load %arg19[%c0_94, %c0_95] : memref<8x16xf32, #tpu.memory_space<vmem>>, vector<8x16xf32>
      tpu.vector_store %arg19[%c0_94, %c0_95], %135 {strides = array<i32>} : memref<8x16xf32, #tpu.memory_space<vmem>>, vector<8x16xf32>,
      %c0_96 = arith.constant 0 : index
      %c0_97 = arith.constant 0 : index
      %c0_98 = arith.constant 0 : index
      %137 = vector.load %arg2[%c0_96, %c0_97, %c0_98] : memref<1x8x16xf32, #tpu.memory_space<vmem>>, vector<1x8x16xf32>
      %138 = vector.shape_cast %137 : vector<1x8x16xf32> to vector<8x16xf32>
      %c0_99 = arith.constant 0 : index
      %c0_100 = arith.constant 0 : index
      %139 = vector.load %arg11[%c0_99, %c0_100] : memref<16x16xf32, #tpu.memory_space<vmem>>, vector<16x16xf32>
      %cst_101 = arith.constant dense<0.000000e+00> : vector<8x16xf32>
      %140 = tpu.matmul %138, %139, %cst_101 {dimension_numbers = #tpu.dot_dimension_numbers<[1], [0], [0], [1], [0, 0, 1, 1], [], []>} : vector<8x16xf32>, vector<16x16xf32>, vector<8x16xf32> -> vector<8x16xf32>
      %c0_102 = arith.constant 0 : index
      %c0_103 = arith.constant 0 : index
      %141 = vector.load %arg12[%c0_102, %c0_103] : memref<1x16xf32, #tpu.memory_space<vmem>>, vector<1x16xf32>
      %142 = vector.broadcast %141 : vector<1x16xf32> to vector<8x16xf32>
      %143 = arith.addf %140, %142 : vector<8x16xf32>
      %c0_104 = arith.constant 0 : index
      %c0_105 = arith.constant 0 : index
      %144 = vector.load %arg20[%c0_104, %c0_105] : memref<8x16xf32, #tpu.memory_space<vmem>>, vector<8x16xf32>
      tpu.vector_store %arg20[%c0_104, %c0_105], %143 {strides = array<i32>} : memref<8x16xf32, #tpu.memory_space<vmem>>, vector<8x16xf32>,
    } else {
    }
    %c8_i32 = arith.constant 8 : i32
    %3 = arith.muli %arg1, %c8_i32 : i32
    %4 = tpu.assume_multiple %3, 8 : i32
    %5 = arith.index_cast %4 : i32 to index
    %c0 = arith.constant 0 : index
    %6 = vector.load %arg18[%5, %c0] : memref<8x16xf32, #tpu.memory_space<vmem>>, vector<8x16xf32>
    %c0_1 = arith.constant 0 : index
    %c0_2 = arith.constant 0 : index
    %7 = vector.load %arg7[%c0_1, %c0_2] : memref<16x16xf32, #tpu.memory_space<vmem>>, vector<16x16xf32>
    %cst = arith.constant dense<0.000000e+00> : vector<8x16xf32>
    %8 = tpu.matmul %6, %7, %cst {dimension_numbers = #tpu.dot_dimension_numbers<[1], [0], [0], [1], [0, 0, 1, 1], [], []>} : vector<8x16xf32>, vector<16x16xf32>, vector<8x16xf32> -> vector<8x16xf32>
    %c0_3 = arith.constant 0 : index
    %c0_4 = arith.constant 0 : index
    %9 = vector.load %arg8[%c0_3, %c0_4] : memref<1x16xf32, #tpu.memory_space<vmem>>, vector<1x16xf32>
    %10 = vector.broadcast %9 : vector<1x16xf32> to vector<8x16xf32>
    %11 = arith.addf %8, %10 : vector<8x16xf32>
    %c0_5 = arith.constant 0 : index
    %c0_6 = arith.constant 0 : index
    %12 = vector.load %arg19[%c0_5, %c0_6] : memref<8x16xf32, #tpu.memory_space<vmem>>, vector<8x16xf32>
    %c0_7 = arith.constant 0 : index
    %c0_8 = arith.constant 0 : index
    %13 = vector.load %arg20[%c0_7, %c0_8] : memref<8x16xf32, #tpu.memory_space<vmem>>, vector<8x16xf32>
    %14 = vector.extract_strided_slice %11 {offsets = [0, 0], sizes = [8, 4], strides = [1, 1]} : vector<8x16xf32> to vector<8x4xf32>
    %15 = vector.extract_strided_slice %12 {offsets = [0, 0], sizes = [8, 4], strides = [1, 1]} : vector<8x16xf32> to vector<8x4xf32>
    %cst_9 = arith.constant dense<0.000000e+00> : vector<8x8xf32>
    %16 = tpu.matmul %14, %15, %cst_9 {dimension_numbers = #tpu.dot_dimension_numbers<[1], [1], [0], [0], [0, 0, 1, 0], [], []>} : vector<8x4xf32>, vector<8x4xf32>, vector<8x8xf32> -> vector<8x8xf32>
    %cst_10 = arith.constant dense<0xFF800000> : vector<8xf32>
    %17 = vector.multi_reduction <maximumf>, %16, %cst_10 [1] : vector<8x8xf32> to vector<8xf32>
    %18 = vector.shape_cast %17 : vector<8xf32> to vector<8x1xf32>
    %19 = vector.broadcast %18 : vector<8x1xf32> to vector<8x8xf32>
    %20 = arith.subf %16, %19 : vector<8x8xf32>
    %21 = math.exp %20 : vector<8x8xf32>
    %cst_11 = arith.constant dense<0.000000e+00> : vector<8xf32>
    %22 = vector.multi_reduction <add>, %21, %cst_11 [1] : vector<8x8xf32> to vector<8xf32>
    %23 = vector.shape_cast %22 : vector<8xf32> to vector<8x1xf32>
    %24 = tpu.reciprocal %23 {approx = true} : vector<8x1xf32> -> vector<8x1xf32>
    %25 = vector.broadcast %24 : vector<8x1xf32> to vector<8x8xf32>
    %26 = arith.mulf %21, %25 : vector<8x8xf32>
    %c0_12 = arith.constant 0 : index
    %c0_13 = arith.constant 0 : index
    %c0_14 = arith.constant 0 : index
    %c0_15 = arith.constant 0 : index
    %27 = vector.load %arg17[%c0_12, %c0_13, %c0_14, %c0_15] : memref<1x4x8x8xf32, #tpu.memory_space<vmem>>, vector<1x1x8x8xf32>
    %28 = vector.shape_cast %27 : vector<1x1x8x8xf32> to vector<8x8xf32>
    %29 = vector.shape_cast %16 : vector<8x8xf32> to vector<1x1x8x8xf32>
    tpu.vector_store %arg17[%c0_12, %c0_13, %c0_14, %c0_15], %29 {strides = array<i32>} : memref<1x4x8x8xf32, #tpu.memory_space<vmem>>, vector<1x1x8x8xf32>,
    %c0_16 = arith.constant 0 : index
    %c0_17 = arith.constant 0 : index
    %c0_18 = arith.constant 0 : index
    %c0_19 = arith.constant 0 : index
    %30 = vector.load %arg16[%c0_16, %c0_17, %c0_18, %c0_19] : memref<1x4x8x8xf32, #tpu.memory_space<vmem>>, vector<1x1x8x8xf32>
    %31 = vector.shape_cast %30 : vector<1x1x8x8xf32> to vector<8x8xf32>
    %32 = vector.shape_cast %26 : vector<8x8xf32> to vector<1x1x8x8xf32>
    tpu.vector_store %arg16[%c0_16, %c0_17, %c0_18, %c0_19], %32 {strides = array<i32>} : memref<1x4x8x8xf32, #tpu.memory_space<vmem>>, vector<1x1x8x8xf32>,
    %33 = vector.extract_strided_slice %13 {offsets = [0, 0], sizes = [8, 4], strides = [1, 1]} : vector<8x16xf32> to vector<8x4xf32>
    %cst_20 = arith.constant dense<0.000000e+00> : vector<8x4xf32>
    %34 = tpu.matmul %26, %33, %cst_20 {dimension_numbers = #tpu.dot_dimension_numbers<[1], [0], [0], [1], [0, 0, 1, 1], [], []>} : vector<8x8xf32>, vector<8x4xf32>, vector<8x4xf32> -> vector<8x4xf32>
    %c0_21 = arith.constant 0 : index
    %c0_22 = arith.constant 0 : index
    %35 = vector.load %arg21[%c0_21, %c0_22] : memref<8x16xf32, #tpu.memory_space<vmem>>, vector<8x4xf32>
    tpu.vector_store %arg21[%c0_21, %c0_22], %34 {strides = array<i32>} : memref<8x16xf32, #tpu.memory_space<vmem>>, vector<8x4xf32>,
    %36 = vector.extract_strided_slice %11 {offsets = [0, 4], sizes = [8, 4], strides = [1, 1]} : vector<8x16xf32> to vector<8x4xf32>
    %37 = vector.extract_strided_slice %12 {offsets = [0, 4], sizes = [8, 4], strides = [1, 1]} : vector<8x16xf32> to vector<8x4xf32>
    %cst_23 = arith.constant dense<0.000000e+00> : vector<8x8xf32>
    %38 = tpu.matmul %36, %37, %cst_23 {dimension_numbers = #tpu.dot_dimension_numbers<[1], [1], [0], [0], [0, 0, 1, 0], [], []>} : vector<8x4xf32>, vector<8x4xf32>, vector<8x8xf32> -> vector<8x8xf32>
    %cst_24 = arith.constant dense<0xFF800000> : vector<8xf32>
    %39 = vector.multi_reduction <maximumf>, %38, %cst_24 [1] : vector<8x8xf32> to vector<8xf32>
    %40 = vector.shape_cast %39 : vector<8xf32> to vector<8x1xf32>
    %41 = vector.broadcast %40 : vector<8x1xf32> to vector<8x8xf32>
    %42 = arith.subf %38, %41 : vector<8x8xf32>
    %43 = math.exp %42 : vector<8x8xf32>
    %cst_25 = arith.constant dense<0.000000e+00> : vector<8xf32>
    %44 = vector.multi_reduction <add>, %43, %cst_25 [1] : vector<8x8xf32> to vector<8xf32>
    %45 = vector.shape_cast %44 : vector<8xf32> to vector<8x1xf32>
    %46 = tpu.reciprocal %45 {approx = true} : vector<8x1xf32> -> vector<8x1xf32>
    %47 = vector.broadcast %46 : vector<8x1xf32> to vector<8x8xf32>
    %48 = arith.mulf %43, %47 : vector<8x8xf32>
    %c0_26 = arith.constant 0 : index
    %c1 = arith.constant 1 : index
    %c0_27 = arith.constant 0 : index
    %c0_28 = arith.constant 0 : index
    %49 = vector.load %arg17[%c0_26, %c1, %c0_27, %c0_28] : memref<1x4x8x8xf32, #tpu.memory_space<vmem>>, vector<1x1x8x8xf32>
    %50 = vector.shape_cast %49 : vector<1x1x8x8xf32> to vector<8x8xf32>
    %51 = vector.shape_cast %38 : vector<8x8xf32> to vector<1x1x8x8xf32>
    tpu.vector_store %arg17[%c0_26, %c1, %c0_27, %c0_28], %51 {strides = array<i32>} : memref<1x4x8x8xf32, #tpu.memory_space<vmem>>, vector<1x1x8x8xf32>,
    %c0_29 = arith.constant 0 : index
    %c1_30 = arith.constant 1 : index
    %c0_31 = arith.constant 0 : index
    %c0_32 = arith.constant 0 : index
    %52 = vector.load %arg16[%c0_29, %c1_30, %c0_31, %c0_32] : memref<1x4x8x8xf32, #tpu.memory_space<vmem>>, vector<1x1x8x8xf32>
    %53 = vector.shape_cast %52 : vector<1x1x8x8xf32> to vector<8x8xf32>
    %54 = vector.shape_cast %48 : vector<8x8xf32> to vector<1x1x8x8xf32>
    tpu.vector_store %arg16[%c0_29, %c1_30, %c0_31, %c0_32], %54 {strides = array<i32>} : memref<1x4x8x8xf32, #tpu.memory_space<vmem>>, vector<1x1x8x8xf32>,
    %55 = vector.extract_strided_slice %13 {offsets = [0, 4], sizes = [8, 4], strides = [1, 1]} : vector<8x16xf32> to vector<8x4xf32>
    %cst_33 = arith.constant dense<0.000000e+00> : vector<8x4xf32>
    %56 = tpu.matmul %48, %55, %cst_33 {dimension_numbers = #tpu.dot_dimension_numbers<[1], [0], [0], [1], [0, 0, 1, 1], [], []>} : vector<8x8xf32>, vector<8x4xf32>, vector<8x4xf32> -> vector<8x4xf32>
    %c0_34 = arith.constant 0 : index
    %c4 = arith.constant 4 : index
    %57 = vector.load %arg21[%c0_34, %c4] : memref<8x16xf32, #tpu.memory_space<vmem>>, vector<8x4xf32>
    tpu.vector_store %arg21[%c0_34, %c4], %56 {strides = array<i32>} : memref<8x16xf32, #tpu.memory_space<vmem>>, vector<8x4xf32>,
    %58 = vector.extract_strided_slice %11 {offsets = [0, 8], sizes = [8, 4], strides = [1, 1]} : vector<8x16xf32> to vector<8x4xf32>
    %59 = vector.extract_strided_slice %12 {offsets = [0, 8], sizes = [8, 4], strides = [1, 1]} : vector<8x16xf32> to vector<8x4xf32>
    %cst_35 = arith.constant dense<0.000000e+00> : vector<8x8xf32>
    %60 = tpu.matmul %58, %59, %cst_35 {dimension_numbers = #tpu.dot_dimension_numbers<[1], [1], [0], [0], [0, 0, 1, 0], [], []>} : vector<8x4xf32>, vector<8x4xf32>, vector<8x8xf32> -> vector<8x8xf32>
    %cst_36 = arith.constant dense<0xFF800000> : vector<8xf32>
    %61 = vector.multi_reduction <maximumf>, %60, %cst_36 [1] : vector<8x8xf32> to vector<8xf32>
    %62 = vector.shape_cast %61 : vector<8xf32> to vector<8x1xf32>
    %63 = vector.broadcast %62 : vector<8x1xf32> to vector<8x8xf32>
    %64 = arith.subf %60, %63 : vector<8x8xf32>
    %65 = math.exp %64 : vector<8x8xf32>
    %cst_37 = arith.constant dense<0.000000e+00> : vector<8xf32>
    %66 = vector.multi_reduction <add>, %65, %cst_37 [1] : vector<8x8xf32> to vector<8xf32>
    %67 = vector.shape_cast %66 : vector<8xf32> to vector<8x1xf32>
    %68 = tpu.reciprocal %67 {approx = true} : vector<8x1xf32> -> vector<8x1xf32>
    %69 = vector.broadcast %68 : vector<8x1xf32> to vector<8x8xf32>
    %70 = arith.mulf %65, %69 : vector<8x8xf32>
    %c0_38 = arith.constant 0 : index
    %c2 = arith.constant 2 : index
    %c0_39 = arith.constant 0 : index
    %c0_40 = arith.constant 0 : index
    %71 = vector.load %arg17[%c0_38, %c2, %c0_39, %c0_40] : memref<1x4x8x8xf32, #tpu.memory_space<vmem>>, vector<1x1x8x8xf32>
    %72 = vector.shape_cast %71 : vector<1x1x8x8xf32> to vector<8x8xf32>
    %73 = vector.shape_cast %60 : vector<8x8xf32> to vector<1x1x8x8xf32>
    tpu.vector_store %arg17[%c0_38, %c2, %c0_39, %c0_40], %73 {strides = array<i32>} : memref<1x4x8x8xf32, #tpu.memory_space<vmem>>, vector<1x1x8x8xf32>,
    %c0_41 = arith.constant 0 : index
    %c2_42 = arith.constant 2 : index
    %c0_43 = arith.constant 0 : index
    %c0_44 = arith.constant 0 : index
    %74 = vector.load %arg16[%c0_41, %c2_42, %c0_43, %c0_44] : memref<1x4x8x8xf32, #tpu.memory_space<vmem>>, vector<1x1x8x8xf32>
    %75 = vector.shape_cast %74 : vector<1x1x8x8xf32> to vector<8x8xf32>
    %76 = vector.shape_cast %70 : vector<8x8xf32> to vector<1x1x8x8xf32>
    tpu.vector_store %arg16[%c0_41, %c2_42, %c0_43, %c0_44], %76 {strides = array<i32>} : memref<1x4x8x8xf32, #tpu.memory_space<vmem>>, vector<1x1x8x8xf32>,
    %77 = vector.extract_strided_slice %13 {offsets = [0, 8], sizes = [8, 4], strides = [1, 1]} : vector<8x16xf32> to vector<8x4xf32>
    %cst_45 = arith.constant dense<0.000000e+00> : vector<8x4xf32>
    %78 = tpu.matmul %70, %77, %cst_45 {dimension_numbers = #tpu.dot_dimension_numbers<[1], [0], [0], [1], [0, 0, 1, 1], [], []>} : vector<8x8xf32>, vector<8x4xf32>, vector<8x4xf32> -> vector<8x4xf32>
    %c0_46 = arith.constant 0 : index
    %c8 = arith.constant 8 : index
    %79 = vector.load %arg21[%c0_46, %c8] : memref<8x16xf32, #tpu.memory_space<vmem>>, vector<8x4xf32>
    tpu.vector_store %arg21[%c0_46, %c8], %78 {strides = array<i32>} : memref<8x16xf32, #tpu.memory_space<vmem>>, vector<8x4xf32>,
    %80 = vector.extract_strided_slice %11 {offsets = [0, 12], sizes = [8, 4], strides = [1, 1]} : vector<8x16xf32> to vector<8x4xf32>
    %81 = vector.extract_strided_slice %12 {offsets = [0, 12], sizes = [8, 4], strides = [1, 1]} : vector<8x16xf32> to vector<8x4xf32>
    %cst_47 = arith.constant dense<0.000000e+00> : vector<8x8xf32>
    %82 = tpu.matmul %80, %81, %cst_47 {dimension_numbers = #tpu.dot_dimension_numbers<[1], [1], [0], [0], [0, 0, 1, 0], [], []>} : vector<8x4xf32>, vector<8x4xf32>, vector<8x8xf32> -> vector<8x8xf32>
    %cst_48 = arith.constant dense<0xFF800000> : vector<8xf32>
    %83 = vector.multi_reduction <maximumf>, %82, %cst_48 [1] : vector<8x8xf32> to vector<8xf32>
    %84 = vector.shape_cast %83 : vector<8xf32> to vector<8x1xf32>
    %85 = vector.broadcast %84 : vector<8x1xf32> to vector<8x8xf32>
    %86 = arith.subf %82, %85 : vector<8x8xf32>
    %87 = math.exp %86 : vector<8x8xf32>
    %cst_49 = arith.constant dense<0.000000e+00> : vector<8xf32>
    %88 = vector.multi_reduction <add>, %87, %cst_49 [1] : vector<8x8xf32> to vector<8xf32>
    %89 = vector.shape_cast %88 : vector<8xf32> to vector<8x1xf32>
    %90 = tpu.reciprocal %89 {approx = true} : vector<8x1xf32> -> vector<8x1xf32>
    %91 = vector.broadcast %90 : vector<8x1xf32> to vector<8x8xf32>
    %92 = arith.mulf %87, %91 : vector<8x8xf32>
    %c0_50 = arith.constant 0 : index
    %c3 = arith.constant 3 : index
    %c0_51 = arith.constant 0 : index
    %c0_52 = arith.constant 0 : index
    %93 = vector.load %arg17[%c0_50, %c3, %c0_51, %c0_52] : memref<1x4x8x8xf32, #tpu.memory_space<vmem>>, vector<1x1x8x8xf32>
    %94 = vector.shape_cast %93 : vector<1x1x8x8xf32> to vector<8x8xf32>
    %95 = vector.shape_cast %82 : vector<8x8xf32> to vector<1x1x8x8xf32>
    tpu.vector_store %arg17[%c0_50, %c3, %c0_51, %c0_52], %95 {strides = array<i32>} : memref<1x4x8x8xf32, #tpu.memory_space<vmem>>, vector<1x1x8x8xf32>,
    %c0_53 = arith.constant 0 : index
    %c3_54 = arith.constant 3 : index
    %c0_55 = arith.constant 0 : index
    %c0_56 = arith.constant 0 : index
    %96 = vector.load %arg16[%c0_53, %c3_54, %c0_55, %c0_56] : memref<1x4x8x8xf32, #tpu.memory_space<vmem>>, vector<1x1x8x8xf32>
    %97 = vector.shape_cast %96 : vector<1x1x8x8xf32> to vector<8x8xf32>
    %98 = vector.shape_cast %92 : vector<8x8xf32> to vector<1x1x8x8xf32>
    tpu.vector_store %arg16[%c0_53, %c3_54, %c0_55, %c0_56], %98 {strides = array<i32>} : memref<1x4x8x8xf32, #tpu.memory_space<vmem>>, vector<1x1x8x8xf32>,
    %99 = vector.extract_strided_slice %13 {offsets = [0, 12], sizes = [8, 4], strides = [1, 1]} : vector<8x16xf32> to vector<8x4xf32>
    %cst_57 = arith.constant dense<0.000000e+00> : vector<8x4xf32>
    %100 = tpu.matmul %92, %99, %cst_57 {dimension_numbers = #tpu.dot_dimension_numbers<[1], [0], [0], [1], [0, 0, 1, 1], [], []>} : vector<8x8xf32>, vector<8x4xf32>, vector<8x4xf32> -> vector<8x4xf32>
    %c0_58 = arith.constant 0 : index
    %c12 = arith.constant 12 : index
    %101 = vector.load %arg21[%c0_58, %c12] : memref<8x16xf32, #tpu.memory_space<vmem>>, vector<8x4xf32>
    tpu.vector_store %arg21[%c0_58, %c12], %100 {strides = array<i32>} : memref<8x16xf32, #tpu.memory_space<vmem>>, vector<8x4xf32>,
    %c0_59 = arith.constant 0 : index
    %c0_60 = arith.constant 0 : index
    %102 = vector.load %arg21[%c0_59, %c0_60] : memref<8x16xf32, #tpu.memory_space<vmem>>, vector<8x16xf32>
    %c0_61 = arith.constant 0 : index
    %c0_62 = arith.constant 0 : index
    %103 = vector.load %arg13[%c0_61, %c0_62] : memref<16x16xf32, #tpu.memory_space<vmem>>, vector<16x16xf32>
    %cst_63 = arith.constant dense<0.000000e+00> : vector<8x16xf32>
    %104 = tpu.matmul %102, %103, %cst_63 {dimension_numbers = #tpu.dot_dimension_numbers<[1], [0], [0], [1], [0, 0, 1, 1], [], []>} : vector<8x16xf32>, vector<16x16xf32>, vector<8x16xf32> -> vector<8x16xf32>
    %c0_64 = arith.constant 0 : index
    %c0_65 = arith.constant 0 : index
    %105 = vector.load %arg14[%c0_64, %c0_65] : memref<1x16xf32, #tpu.memory_space<vmem>>, vector<1x16xf32>
    %106 = vector.broadcast %105 : vector<1x16xf32> to vector<8x16xf32>
    %107 = arith.addf %104, %106 : vector<8x16xf32>
    %c0_66 = arith.constant 0 : index
    %c0_67 = arith.constant 0 : index
    %c0_68 = arith.constant 0 : index
    %108 = vector.load %arg15[%c0_66, %c0_67, %c0_68] : memref<1x8x16xf32, #tpu.memory_space<vmem>>, vector<1x8x16xf32>
    %109 = vector.shape_cast %108 : vector<1x8x16xf32> to vector<8x16xf32>
    %110 = vector.shape_cast %107 : vector<8x16xf32> to vector<1x8x16xf32>
    tpu.vector_store %arg15[%c0_66, %c0_67, %c0_68], %110 {strides = array<i32>} : memref<1x8x16xf32, #tpu.memory_space<vmem>>, vector<1x8x16xf32>,
    return
  }
  func.func @transform_0(%arg0: i32, %arg1: i32) -> (i32, i32, i32) {
    %c0_i32 = arith.constant 0 : i32
    %c0_i32_0 = arith.constant 0 : i32
    %c0_i32_1 = arith.constant 0 : i32
    return %arg0, %c0_i32, %c0_i32_0 : i32, i32, i32
  }
  func.func @transform_1(%arg0: i32, %arg1: i32) -> (i32, i32) {
    %c0_i32 = arith.constant 0 : i32
    %c0_i32_0 = arith.constant 0 : i32
    %c0_i32_1 = arith.constant 0 : i32
    return %c0_i32, %c0_i32_0 : i32, i32
  }
  func.func @transform_2(%arg0: i32, %arg1: i32) -> (i32, i32) {
    %c0_i32 = arith.constant 0 : i32
    %c0_i32_0 = arith.constant 0 : i32
    %c0_i32_1 = arith.constant 0 : i32
    return %c0_i32, %c0_i32_0 : i32, i32
  }
  func.func @transform_3(%arg0: i32, %arg1: i32) -> (i32, i32) {
    %c0_i32 = arith.constant 0 : i32
    %c0_i32_0 = arith.constant 0 : i32
    %c0_i32_1 = arith.constant 0 : i32
    return %c0_i32, %c0_i32_0 : i32, i32
  }
  func.func @transform_4(%arg0: i32, %arg1: i32) -> (i32, i32) {
    %c0_i32 = arith.constant 0 : i32
    %c0_i32_0 = arith.constant 0 : i32
    %c0_i32_1 = arith.constant 0 : i32
    return %c0_i32, %c0_i32_0 : i32, i32
  }
  func.func @transform_5(%arg0: i32, %arg1: i32) -> (i32, i32) {
    %c0_i32 = arith.constant 0 : i32
    %c0_i32_0 = arith.constant 0 : i32
    %c0_i32_1 = arith.constant 0 : i32
    return %c0_i32, %c0_i32_0 : i32, i32
  }
  func.func @transform_6(%arg0: i32, %arg1: i32) -> (i32, i32) {
    %c0_i32 = arith.constant 0 : i32
    %c0_i32_0 = arith.constant 0 : i32
    %c0_i32_1 = arith.constant 0 : i32
    return %c0_i32, %c0_i32_0 : i32, i32
  }
  func.func @transform_7(%arg0: i32, %arg1: i32) -> (i32, i32) {
    %c0_i32 = arith.constant 0 : i32
    %c0_i32_0 = arith.constant 0 : i32
    %c0_i32_1 = arith.constant 0 : i32
    return %c0_i32, %c0_i32_0 : i32, i32
  }
  func.func @transform_8(%arg0: i32, %arg1: i32) -> (i32, i32) {
    %c0_i32 = arith.constant 0 : i32
    %c0_i32_0 = arith.constant 0 : i32
    %c0_i32_1 = arith.constant 0 : i32
    return %c0_i32, %c0_i32_0 : i32, i32
  }
  func.func @transform_9(%arg0: i32, %arg1: i32) -> (i32, i32) {
    %c0_i32 = arith.constant 0 : i32
    %c0_i32_0 = arith.constant 0 : i32
    %c0_i32_1 = arith.constant 0 : i32
    return %c0_i32, %c0_i32_0 : i32, i32
  }
  func.func @transform_10(%arg0: i32, %arg1: i32) -> (i32, i32) {
    %c0_i32 = arith.constant 0 : i32
    %c0_i32_0 = arith.constant 0 : i32
    %c0_i32_1 = arith.constant 0 : i32
    return %c0_i32, %c0_i32_0 : i32, i32
  }
  func.func @transform_11(%arg0: i32, %arg1: i32) -> (i32, i32) {
    %c0_i32 = arith.constant 0 : i32
    %c0_i32_0 = arith.constant 0 : i32
    %c0_i32_1 = arith.constant 0 : i32
    return %c0_i32, %c0_i32_0 : i32, i32
  }
  func.func @transform_12(%arg0: i32, %arg1: i32) -> (i32, i32) {
    %c0_i32 = arith.constant 0 : i32
    %c0_i32_0 = arith.constant 0 : i32
    %c0_i32_1 = arith.constant 0 : i32
    return %c0_i32, %c0_i32_0 : i32, i32
  }
  func.func @transform_13(%arg0: i32, %arg1: i32) -> (i32, i32, i32) {
    %c0_i32 = arith.constant 0 : i32
    %c0_i32_0 = arith.constant 0 : i32
    return %arg0, %arg1, %c0_i32 : i32, i32, i32
  }
  func.func @transform_14(%arg0: i32, %arg1: i32) -> (i32, i32, i32, i32) {
    %c0_i32 = arith.constant 0 : i32
    %c0_i32_0 = arith.constant 0 : i32
    %c0_i32_1 = arith.constant 0 : i32
    return %arg0, %c0_i32, %arg1, %c0_i32_0 : i32, i32, i32, i32
  }
  func.func @transform_15(%arg0: i32, %arg1: i32) -> (i32, i32, i32, i32) {
    %c0_i32 = arith.constant 0 : i32
    %c0_i32_0 = arith.constant 0 : i32
    %c0_i32_1 = arith.constant 0 : i32
    return %arg0, %c0_i32, %arg1, %c0_i32_0 : i32, i32, i32, i32
  }
}

</mosaic_0001>

<llo_original>
// kernel: graformer_mha.1
$region0: #{graformer_mha.1}
  #allocation0 [shape = 'u32[]', space=smem, size = 0x4, offset = 0x4, fixed_abs, tag = 'smem constant byte address 0x4 - core index']
  #allocation1 [shape = 'u32[144,128]{1,0:T(1,128)}', space=vmem, size = 0x12000, scoped, tag = 'internal scratch']
  #allocation2 [shape = 'f32[8,16]{1,0:T(8,128)}', space=vmem, size = 0x1000, scoped, tag = 'scratch operand']
  #allocation3 [shape = 'f32[8,16]{1,0:T(8,128)}', space=vmem, size = 0x1000, scoped, tag = 'scratch operand']
  #allocation4 [shape = 'f32[8,16]{1,0:T(8,128)}', space=vmem, size = 0x1000, scoped, tag = 'scratch operand']
  #allocation5 [shape = 'f32[8,16]{1,0:T(8,128)}', space=vmem, size = 0x1000, scoped, tag = 'scratch operand']
  %s0 = inlined_call_operand.vmem [shape: f32[2,8,16], index: 0, kind: input, shape index: {}]
  %s1 = inlined_call_operand.vmem [shape: f32[2,16], index: 1, kind: input, shape index: {}]
  %s2 = inlined_call_operand.vmem [shape: f32[2,16], index: 2, kind: input, shape index: {}]
  %s3 = inlined_call_operand.vmem [shape: f32[2,16], index: 3, kind: input, shape index: {}]
  %s4 = inlined_call_operand.vmem [shape: f32[1,16], index: 4, kind: input, shape index: {}]
  %s5 = inlined_call_operand.vmem [shape: f32[16,16], index: 5, kind: input, shape index: {}]
  %s6 = inlined_call_operand.vmem [shape: f32[1,16], index: 6, kind: input, shape index: {}]
  %s7 = inlined_call_operand.vmem [shape: f32[16,16], index: 7, kind: input, shape index: {}]
  %s8 = inlined_call_operand.vmem [shape: f32[1,16], index: 8, kind: input, shape index: {}]
  %s9 = inlined_call_operand.vmem [shape: f32[16,16], index: 9, kind: input, shape index: {}]
  %s10 = inlined_call_operand.vmem [shape: f32[1,16], index: 10, kind: input, shape index: {}]
  %s11 = inlined_call_operand.hbm [shape: f32[16,16], index: 11, kind: input, shape index: {}]
  %s12 = inlined_call_operand.vmem [shape: f32[1,16], index: 12, kind: input, shape index: {}]
  %s13 = inlined_call_operand.hbm [shape: f32[2,8,16], index: 13, kind: output, shape index: {0}]
  %s14 = inlined_call_operand.hbm [shape: f32[2,4,8,8], index: 14, kind: output, shape index: {1}]
  %s15 = inlined_call_operand.hbm [shape: f32[2,4,8,8], index: 15, kind: output, shape index: {2}]
  %16 = xla_tuple %s13, %s14, %s15
  %s17 = sld [smem:[#allocation0]]
  $region116: #{graformer_mha.1} parent=0
    _
  %s19 = ssub.s32 1, %s17
  %s20 = scalar_select 0, %s19, %s17
  $region1: #{graformer_mha.1} parent=0
    #allocation6 [shape = 'u8[8192]{0}', space=vmem, size = 0x2000, scoped, tag = 'input window, operand 11, single buffered']
    #allocation7 [shape = 's32[2]{0}', space=sflag, size = 0x8, scoped, tag = 'scoped memory for graformer_mha.1']
    #allocation8 [shape = 's32[2]{0}', space=sflag, size = 0x8, scoped, tag = 'scoped memory for graformer_mha.1']
    #allocation9 [shape = 'u8[8192]{0}', space=vmem, size = 0x2000, scoped, tag = 'output window, operand 0']
    #allocation10 [shape = 'u8[32768]{0}', space=vmem, size = 0x8000, scoped, tag = 'output window, operand 1']
    #allocation11 [shape = 's32[2]{0}', space=sflag, size = 0x8, scoped, tag = 'scoped memory for graformer_mha.1']
    #allocation12 [shape = 'u8[32768]{0}', space=vmem, size = 0x8000, scoped, tag = 'output window, operand 2']
    %21 = vsyncpa [#allocation7], 0
    %22 = vsyncpa [#allocation8], 0
    %s23 = scalar_lea.sflag [#allocation8], 1
    %24 = vsyncpa %s23, 0
    %25 = vsyncpa [#allocation11], 0
    %s26 = scalar_lea.sflag [#allocation11], 1
    %27 = vsyncpa %s26, 0
    loop: start=0, step=1, limit=4
    $region2: #{graformer_mha.1} parent=1 // loop_pre_header
      _
    $region3: #{graformer_mha.1} parent=1 // loop_header
      %s29 = sphi 0, %s33
      %p30 = scmp.ge.s32.totalorder %s29, 4
      %s36 = sphi 0, %s48
      %s37 = sphi 0, %s44
      %s38 = sphi 0, %s36
      %s39 = sphi 0, %s37
      %s40 = sphi 0, %s38
      %s41 = sphi 0, %s39
      %s51 = sphi 0, %s53
      %s54 = sphi 0, %s51
      %s55 = sphi 0, %s54
      %s71 = sphi 0, %s55
      %s75 = sphi 0, %s75
      %s77 = sphi 0, %s75
      %s78 = sphi 0, %s77
      %s92 = sphi 0, %s78
      %s96 = sphi 0, %s96
      %s98 = sphi 0, %s96
      %s99 = sphi 0, %s98
      %s113 = sphi 0, %s99
      %s117 = sphi 0, %s117
      %s119 = sphi 0, %s117
      %s120 = sphi 0, %s119
      %s134 = sphi 0, %s120
      %s138 = sphi 0, %s138
      %s140 = sphi 0, %s138
      %s141 = sphi 0, %s140
      %s155 = sphi 0, %s141
      %s159 = sphi 0, %s159
      %s161 = sphi 0, %s159
      %s162 = sphi 0, %s161
      %s176 = sphi 0, %s162
      %s180 = sphi 0, %s180
      %s182 = sphi 0, %s180
      %s183 = sphi 0, %s182
      %s197 = sphi 0, %s183
      %s201 = sphi 0, %s201
      %s203 = sphi 0, %s201
      %s204 = sphi 0, %s203
      %s218 = sphi 0, %s204
      %s222 = sphi 0, %s222
      %s224 = sphi 0, %s222
      %s225 = sphi 0, %s224
      %s239 = sphi 0, %s225
      %s243 = sphi 0, %s243
      %s245 = sphi 0, %s243
      %s246 = sphi 0, %s245
      %s260 = sphi 0, %s246
      %s264 = sphi 0, %s264
      %s266 = sphi 0, %s264
      %s267 = sphi 0, %s266
      %s281 = sphi 0, %s267
      %s285 = sphi 0, %s285
      %s287 = sphi 0, %s285
      %s288 = sphi 0, %s287
      %s302 = sphi 0, %s288
      %s306 = sphi 0, %s306
      %s308 = sphi 0, %s306
      %s309 = sphi 0, %s308
      %s323 = sphi 0, %s309
      %s331 = sphi 0, %s333
      %s334 = sphi 0, %s331
      %s335 = sphi 0, %s334
      %s351 = sphi 0, %s335
      %s359 = sphi 0, %s361
      %s362 = sphi 0, %s359
      %s363 = sphi 0, %s362
      %s379 = sphi 0, %s363
      %s387 = sphi 0, %s389
      %s390 = sphi 0, %s387
      %s391 = sphi 0, %s390
      %s407 = sphi 0, %s391
    $region4: #{graformer_mha.1} parent=1 // loop_header_branch
      %32 = sbr.rel (%p30) target = $region8
    $region5: #{graformer_mha.1} parent=1 // loop_body
      %s34 = ssub.s32 %s29, 1
      %s35 = ssub.s32 %s29, 2
      %s42 = sadd.s32 1, %s37
      %p43 = scmp.ge.s32.totalorder %s42, 1
      %s44 = scalar_select %p43, 0, %s42
      %s45 = sadd.s32 1, %s36
      %s46 = scalar_select %p43, %s45, %s36
      %p47 = scmp.ge.s32.totalorder %s46, 2
      %s48 = scalar_select %p47, 0, %s46
      %s49 = ssub.s32 %s36, %s48
      %p50 = scmp.eq.s32.totalorder %s49, 0
      %s52 = sadd.s32 %s51, 1
      %s53 = scalar_select %p50, %s51, %s52
      %p56 = pneg %p50
      %p57 = scmp.eq.s32.totalorder %s29, 1
      %p58 = por %p56, %p57
      %p59 = scmp.ne.s32.totalorder %s51, %s54
      %p60 = scmp.eq.s32.totalorder %s29, 0
      %p61 = por %p59, %p60
      %p62 = scmp.ne.s32.totalorder %s51, %s54
      %p63 = scmp.eq.s32.totalorder %s34, 1
      %p64 = por %p62, %p63
      %p65 = scmp.ne.s32.totalorder %s54, %s55
      %p66 = scmp.eq.s32.totalorder %s34, 0
      %p67 = por %p65, %p66
      %p68 = scmp.ne.s32.totalorder %s54, %s55
      %p69 = scmp.eq.s32.totalorder %s35, 1
      %p70 = por %p68, %p69
      %p72 = scmp.ne.s32.totalorder %s55, %s71
      %p73 = scmp.eq.s32.totalorder %s35, 0
      %p74 = por %p72, %p73
      %s76 = sadd.s32 %s75, 1
      %p79 = scmp.eq.s32.totalorder %s29, 1
      %p80 = scmp.ne.s32.totalorder %s75, %s77
      %p81 = scmp.eq.s32.totalorder %s29, 0
      %p82 = por %p80, %p81
      %p83 = scmp.ne.s32.totalorder %s75, %s77
      %p84 = scmp.eq.s32.totalorder %s34, 1
      %p85 = por %p83, %p84
      %p86 = scmp.ne.s32.totalorder %s77, %s78
      %p87 = scmp.eq.s32.totalorder %s34, 0
      %p88 = por %p86, %p87
      %p89 = scmp.ne.s32.totalorder %s77, %s78
      %p90 = scmp.eq.s32.totalorder %s35, 1
      %p91 = por %p89, %p90
      %p93 = scmp.ne.s32.totalorder %s78, %s92
      %p94 = scmp.eq.s32.totalorder %s35, 0
      %p95 = por %p93, %p94
      %s97 = sadd.s32 %s96, 1
      %p100 = scmp.eq.s32.totalorder %s29, 1
      %p101 = scmp.ne.s32.totalorder %s96, %s98
      %p102 = scmp.eq.s32.totalorder %s29, 0
      %p103 = por %p101, %p102
      %p104 = scmp.ne.s32.totalorder %s96, %s98
      %p105 = scmp.eq.s32.totalorder %s34, 1
      %p106 = por %p104, %p105
      %p107 = scmp.ne.s32.totalorder %s98, %s99
      %p108 = scmp.eq.s32.totalorder %s34, 0
      %p109 = por %p107, %p108
      %p110 = scmp.ne.s32.totalorder %s98, %s99
      %p111 = scmp.eq.s32.totalorder %s35, 1
      %p112 = por %p110, %p111
      %p114 = scmp.ne.s32.totalorder %s99, %s113
      %p115 = scmp.eq.s32.totalorder %s35, 0
      %p116 = por %p114, %p115
      %s118 = sadd.s32 %s117, 1
      %p121 = scmp.eq.s32.totalorder %s29, 1
      %p122 = scmp.ne.s32.totalorder %s117, %s119
      %p123 = scmp.eq.s32.totalorder %s29, 0
      %p124 = por %p122, %p123
      %p125 = scmp.ne.s32.totalorder %s117, %s119
      %p126 = scmp.eq.s32.totalorder %s34, 1
      %p127 = por %p125, %p126
      %p128 = scmp.ne.s32.totalorder %s119, %s120
      %p129 = scmp.eq.s32.totalorder %s34, 0
      %p130 = por %p128, %p129
      %p131 = scmp.ne.s32.totalorder %s119, %s120
      %p132 = scmp.eq.s32.totalorder %s35, 1
      %p133 = por %p131, %p132
      %p135 = scmp.ne.s32.totalorder %s120, %s134
      %p136 = scmp.eq.s32.totalorder %s35, 0
      %p137 = por %p135, %p136
      %s139 = sadd.s32 %s138, 1
      %p142 = scmp.eq.s32.totalorder %s29, 1
      %p143 = scmp.ne.s32.totalorder %s138, %s140
      %p144 = scmp.eq.s32.totalorder %s29, 0
      %p145 = por %p143, %p144
      %p146 = scmp.ne.s32.totalorder %s138, %s140
      %p147 = scmp.eq.s32.totalorder %s34, 1
      %p148 = por %p146, %p147
      %p149 = scmp.ne.s32.totalorder %s140, %s141
      %p150 = scmp.eq.s32.totalorder %s34, 0
      %p151 = por %p149, %p150
      %p152 = scmp.ne.s32.totalorder %s140, %s141
      %p153 = scmp.eq.s32.totalorder %s35, 1
      %p154 = por %p152, %p153
      %p156 = scmp.ne.s32.totalorder %s141, %s155
      %p157 = scmp.eq.s32.totalorder %s35, 0
      %p158 = por %p156, %p157
      %s160 = sadd.s32 %s159, 1
      %p163 = scmp.eq.s32.totalorder %s29, 1
      %p164 = scmp.ne.s32.totalorder %s159, %s161
      %p165 = scmp.eq.s32.totalorder %s29, 0
      %p166 = por %p164, %p165
      %p167 = scmp.ne.s32.totalorder %s159, %s161
      %p168 = scmp.eq.s32.totalorder %s34, 1
      %p169 = por %p167, %p168
      %p170 = scmp.ne.s32.totalorder %s161, %s162
      %p171 = scmp.eq.s32.totalorder %s34, 0
      %p172 = por %p170, %p171
      %p173 = scmp.ne.s32.totalorder %s161, %s162
      %p174 = scmp.eq.s32.totalorder %s35, 1
      %p175 = por %p173, %p174
      %p177 = scmp.ne.s32.totalorder %s162, %s176
      %p178 = scmp.eq.s32.totalorder %s35, 0
      %p179 = por %p177, %p178
      %s181 = sadd.s32 %s180, 1
      %p184 = scmp.eq.s32.totalorder %s29, 1
      %p185 = scmp.ne.s32.totalorder %s180, %s182
      %p186 = scmp.eq.s32.totalorder %s29, 0
      %p187 = por %p185, %p186
      %p188 = scmp.ne.s32.totalorder %s180, %s182
      %p189 = scmp.eq.s32.totalorder %s34, 1
      %p190 = por %p188, %p189
      %p191 = scmp.ne.s32.totalorder %s182, %s183
      %p192 = scmp.eq.s32.totalorder %s34, 0
      %p193 = por %p191, %p192
      %p194 = scmp.ne.s32.totalorder %s182, %s183
      %p195 = scmp.eq.s32.totalorder %s35, 1
      %p196 = por %p194, %p195
      %p198 = scmp.ne.s32.totalorder %s183, %s197
      %p199 = scmp.eq.s32.totalorder %s35, 0
      %p200 = por %p198, %p199
      %s202 = sadd.s32 %s201, 1
      %p205 = scmp.eq.s32.totalorder %s29, 1
      %p206 = scmp.ne.s32.totalorder %s201, %s203
      %p207 = scmp.eq.s32.totalorder %s29, 0
      %p208 = por %p206, %p207
      %p209 = scmp.ne.s32.totalorder %s201, %s203
      %p210 = scmp.eq.s32.totalorder %s34, 1
      %p211 = por %p209, %p210
      %p212 = scmp.ne.s32.totalorder %s203, %s204
      %p213 = scmp.eq.s32.totalorder %s34, 0
      %p214 = por %p212, %p213
      %p215 = scmp.ne.s32.totalorder %s203, %s204
      %p216 = scmp.eq.s32.totalorder %s35, 1
      %p217 = por %p215, %p216
      %p219 = scmp.ne.s32.totalorder %s204, %s218
      %p220 = scmp.eq.s32.totalorder %s35, 0
      %p221 = por %p219, %p220
      %s223 = sadd.s32 %s222, 1
      %p226 = scmp.eq.s32.totalorder %s29, 1
      %p227 = scmp.ne.s32.totalorder %s222, %s224
      %p228 = scmp.eq.s32.totalorder %s29, 0
      %p229 = por %p227, %p228
      %p230 = scmp.ne.s32.totalorder %s222, %s224
      %p231 = scmp.eq.s32.totalorder %s34, 1
      %p232 = por %p230, %p231
      %p233 = scmp.ne.s32.totalorder %s224, %s225
      %p234 = scmp.eq.s32.totalorder %s34, 0
      %p235 = por %p233, %p234
      %p236 = scmp.ne.s32.totalorder %s224, %s225
      %p237 = scmp.eq.s32.totalorder %s35, 1
      %p238 = por %p236, %p237
      %p240 = scmp.ne.s32.totalorder %s225, %s239
      %p241 = scmp.eq.s32.totalorder %s35, 0
      %p242 = por %p240, %p241
      %s244 = sadd.s32 %s243, 1
      %p247 = scmp.eq.s32.totalorder %s29, 1
      %p248 = scmp.ne.s32.totalorder %s243, %s245
      %p249 = scmp.eq.s32.totalorder %s29, 0
      %p250 = por %p248, %p249
      %p251 = scmp.ne.s32.totalorder %s243, %s245
      %p252 = scmp.eq.s32.totalorder %s34, 1
      %p253 = por %p251, %p252
      %p254 = scmp.ne.s32.totalorder %s245, %s246
      %p255 = scmp.eq.s32.totalorder %s34, 0
      %p256 = por %p254, %p255
      %p257 = scmp.ne.s32.totalorder %s245, %s246
      %p258 = scmp.eq.s32.totalorder %s35, 1
      %p259 = por %p257, %p258
      %p261 = scmp.ne.s32.totalorder %s246, %s260
      %p262 = scmp.eq.s32.totalorder %s35, 0
      %p263 = por %p261, %p262
      %s265 = sadd.s32 %s264, 1
      %p268 = scmp.eq.s32.totalorder %s29, 1
      %p269 = scmp.ne.s32.totalorder %s264, %s266
      %p270 = scmp.eq.s32.totalorder %s29, 0
      %p271 = por %p269, %p270
      %p272 = scmp.ne.s32.totalorder %s264, %s266
      %p273 = scmp.eq.s32.totalorder %s34, 1
      %p274 = por %p272, %p273
      %p275 = scmp.ne.s32.totalorder %s266, %s267
      %p276 = scmp.eq.s32.totalorder %s34, 0
      %p277 = por %p275, %p276
      %p278 = scmp.ne.s32.totalorder %s266, %s267
      %p279 = scmp.eq.s32.totalorder %s35, 1
      %p280 = por %p278, %p279
      %p282 = scmp.ne.s32.totalorder %s267, %s281
      %p283 = scmp.eq.s32.totalorder %s35, 0
      %p284 = por %p282, %p283
      %s286 = sadd.s32 %s285, 1
      %p289 = scmp.eq.s32.totalorder %s29, 1
      %p290 = scmp.ne.s32.totalorder %s285, %s287
      %p291 = scmp.eq.s32.totalorder %s29, 0
      %p292 = por %p290, %p291
      %p293 = scmp.ne.s32.totalorder %s285, %s287
      %p294 = scmp.eq.s32.totalorder %s34, 1
      %p295 = por %p293, %p294
      %p296 = scmp.ne.s32.totalorder %s287, %s288
      %p297 = scmp.eq.s32.totalorder %s34, 0
      %p298 = por %p296, %p297
      %p299 = scmp.ne.s32.totalorder %s287, %s288
      %p300 = scmp.eq.s32.totalorder %s35, 1
      %p301 = por %p299, %p300
      %p303 = scmp.ne.s32.totalorder %s288, %s302
      %p304 = scmp.eq.s32.totalorder %s35, 0
      %p305 = por %p303, %p304
      %s307 = sadd.s32 %s306, 1
      %p310 = scmp.eq.s32.totalorder %s29, 1
      %p311 = scmp.ne.s32.totalorder %s306, %s308
      %p312 = scmp.eq.s32.totalorder %s29, 0
      %p313 = por %p311, %p312
      %p314 = scmp.ne.s32.totalorder %s306, %s308
      %p315 = scmp.eq.s32.totalorder %s34, 1
      %p316 = por %p314, %p315
      %p317 = scmp.ne.s32.totalorder %s308, %s309
      %p318 = scmp.eq.s32.totalorder %s34, 0
      %p319 = por %p317, %p318
      %p320 = scmp.ne.s32.totalorder %s308, %s309
      %p321 = scmp.eq.s32.totalorder %s35, 1
      %p322 = por %p320, %p321
      %p324 = scmp.ne.s32.totalorder %s309, %s323
      %p325 = scmp.eq.s32.totalorder %s35, 0
      %p326 = por %p324, %p325
      %s327 = ssub.s32 %s36, %s48
      %s328 = ssub.s32 %s37, %s44
      %s329 = sor.u32 %s327, %s328
      %p330 = scmp.eq.s32.totalorder %s329, 0
      %s332 = sadd.s32 %s331, 1
      %s333 = scalar_select %p330, %s331, %s332
      %p336 = pneg %p330
      %p337 = scmp.eq.s32.totalorder %s29, 1
      %p338 = por %p336, %p337
      %p339 = scmp.ne.s32.totalorder %s331, %s334
      %p340 = scmp.eq.s32.totalorder %s29, 0
      %p341 = por %p339, %p340
      %p342 = scmp.ne.s32.totalorder %s331, %s334
      %p343 = scmp.eq.s32.totalorder %s34, 1
      %p344 = por %p342, %p343
      %p345 = scmp.ne.s32.totalorder %s334, %s335
      %p346 = scmp.eq.s32.totalorder %s34, 0
      %p347 = por %p345, %p346
      %p348 = scmp.ne.s32.totalorder %s334, %s335
      %p349 = scmp.eq.s32.totalorder %s35, 1
      %p350 = por %p348, %p349
      %p352 = scmp.ne.s32.totalorder %s335, %s351
      %p353 = scmp.eq.s32.totalorder %s35, 0
      %p354 = por %p352, %p353
      %s355 = ssub.s32 %s36, %s48
      %s356 = ssub.s32 %s37, %s44
      %s357 = sor.u32 %s355, %s356
      %p358 = scmp.eq.s32.totalorder %s357, 0
      %s360 = sadd.s32 %s359, 1
      %s361 = scalar_select %p358, %s359, %s360
      %p364 = pneg %p358
      %p365 = scmp.eq.s32.totalorder %s29, 1
      %p366 = por %p364, %p365
      %p367 = scmp.ne.s32.totalorder %s359, %s362
      %p368 = scmp.eq.s32.totalorder %s29, 0
      %p369 = por %p367, %p368
      %p370 = scmp.ne.s32.totalorder %s359, %s362
      %p371 = scmp.eq.s32.totalorder %s34, 1
      %p372 = por %p370, %p371
      %p373 = scmp.ne.s32.totalorder %s362, %s363
      %p374 = scmp.eq.s32.totalorder %s34, 0
      %p375 = por %p373, %p374
      %p376 = scmp.ne.s32.totalorder %s362, %s363
      %p377 = scmp.eq.s32.totalorder %s35, 1
      %p378 = por %p376, %p377
      %p380 = scmp.ne.s32.totalorder %s363, %s379
      %p381 = scmp.eq.s32.totalorder %s35, 0
      %p382 = por %p380, %p381
      %s383 = ssub.s32 %s36, %s48
      %s384 = ssub.s32 %s37, %s44
      %s385 = sor.u32 %s383, %s384
      %p386 = scmp.eq.s32.totalorder %s385, 0
      %s388 = sadd.s32 %s387, 1
      %s389 = scalar_select %p386, %s387, %s388
      %p392 = pneg %p386
      %p393 = scmp.eq.s32.totalorder %s29, 1
      %p394 = por %p392, %p393
      %p395 = scmp.ne.s32.totalorder %s387, %s390
      %p396 = scmp.eq.s32.totalorder %s29, 0
      %p397 = por %p395, %p396
      %p398 = scmp.ne.s32.totalorder %s387, %s390
      %p399 = scmp.eq.s32.totalorder %s34, 1
      %p400 = por %p398, %p399
      %p401 = scmp.ne.s32.totalorder %s390, %s391
      %p402 = scmp.eq.s32.totalorder %s34, 0
      %p403 = por %p401, %p402
      %p404 = scmp.ne.s32.totalorder %s390, %s391
      %p405 = scmp.eq.s32.totalorder %s35, 1
      %p406 = por %p404, %p405
      %p408 = scmp.ne.s32.totalorder %s391, %s407
      %p409 = scmp.eq.s32.totalorder %s35, 0
      %p410 = por %p408, %p409
      %p411 = scmp.le.s32.totalorder 1, %s29
      %p412 = scmp.lt.s32.totalorder %s29, 3
      %p413 = pnand %p411, %p412
      %p414 = pneg %p413
      // Predicated region
      $region9: #{graformer_mha.1} parent=5 // pred_check
        _
      $region10: #{graformer_mha.1} parent=5 // pred_check_branch
        %416 = sbr.rel (%p413) target = $region12
      $region11: #{graformer_mha.1} parent=5 // pred_region
        %s417 = ssub.s32 %s29, 1
        // Predicated region
        $region13: #{graformer_mha.1} parent=11 // pred_check
          %p418 = pneg %p88
        $region14: #{graformer_mha.1} parent=11 // pred_check_branch
          %420 = sbr.rel (%p418) target = $region16
        $region15: #{graformer_mha.1} parent=11 // pred_region
          _
        $region16: #{graformer_mha.1} parent=11 // pred_fallthru
          _
        // Predicated region
        $region17: #{graformer_mha.1} parent=11 // pred_check
          %p421 = pneg %p109
        $region18: #{graformer_mha.1} parent=11 // pred_check_branch
          %423 = sbr.rel (%p421) target = $region20
        $region19: #{graformer_mha.1} parent=11 // pred_region
          _
        $region20: #{graformer_mha.1} parent=11 // pred_fallthru
          _
        // Predicated region
        $region21: #{graformer_mha.1} parent=11 // pred_check
          %p424 = pneg %p130
        $region22: #{graformer_mha.1} parent=11 // pred_check_branch
          %426 = sbr.rel (%p424) target = $region24
        $region23: #{graformer_mha.1} parent=11 // pred_region
          _
        $region24: #{graformer_mha.1} parent=11 // pred_fallthru
          _
        // Predicated region
        $region25: #{graformer_mha.1} parent=11 // pred_check
          %p427 = pneg %p151
        $region26: #{graformer_mha.1} parent=11 // pred_check_branch
          %429 = sbr.rel (%p427) target = $region28
        $region27: #{graformer_mha.1} parent=11 // pred_region
          _
        $region28: #{graformer_mha.1} parent=11 // pred_fallthru
          _
        // Predicated region
        $region29: #{graformer_mha.1} parent=11 // pred_check
          %p430 = pneg %p172
        $region30: #{graformer_mha.1} parent=11 // pred_check_branch
          %432 = sbr.rel (%p430) target = $region32
        $region31: #{graformer_mha.1} parent=11 // pred_region
          _
        $region32: #{graformer_mha.1} parent=11 // pred_fallthru
          _
        // Predicated region
        $region33: #{graformer_mha.1} parent=11 // pred_check
          %p433 = pneg %p193
        $region34: #{graformer_mha.1} parent=11 // pred_check_branch
          %435 = sbr.rel (%p433) target = $region36
        $region35: #{graformer_mha.1} parent=11 // pred_region
          _
        $region36: #{graformer_mha.1} parent=11 // pred_fallthru
          _
        // Predicated region
        $region37: #{graformer_mha.1} parent=11 // pred_check
          %p436 = pneg %p214
        $region38: #{graformer_mha.1} parent=11 // pred_check_branch
          %438 = sbr.rel (%p436) target = $region40
        $region39: #{graformer_mha.1} parent=11 // pred_region
          _
        $region40: #{graformer_mha.1} parent=11 // pred_fallthru
          _
        // Predicated region
        $region41: #{graformer_mha.1} parent=11 // pred_check
          %p439 = pneg %p235
        $region42: #{graformer_mha.1} parent=11 // pred_check_branch
          %441 = sbr.rel (%p439) target = $region44
        $region43: #{graformer_mha.1} parent=11 // pred_region
          _
        $region44: #{graformer_mha.1} parent=11 // pred_fallthru
          _
        // Predicated region
        $region45: #{graformer_mha.1} parent=11 // pred_check
          %p442 = pneg %p256
        $region46: #{graformer_mha.1} parent=11 // pred_check_branch
          %444 = sbr.rel (%p442) target = $region48
        $region47: #{graformer_mha.1} parent=11 // pred_region
          _
        $region48: #{graformer_mha.1} parent=11 // pred_fallthru
          _
        // Predicated region
        $region49: #{graformer_mha.1} parent=11 // pred_check
          %p445 = pneg %p277
        $region50: #{graformer_mha.1} parent=11 // pred_check_branch
          %447 = sbr.rel (%p445) target = $region52
        $region51: #{graformer_mha.1} parent=11 // pred_region
          _
        $region52: #{graformer_mha.1} parent=11 // pred_fallthru
          _
        // Predicated region
        $region53: #{graformer_mha.1} parent=11 // pred_check
          %p448 = pneg %p298
        $region54: #{graformer_mha.1} parent=11 // pred_check_branch
          %450 = sbr.rel (%p448) target = $region56
        $region55: #{graformer_mha.1} parent=11 // pred_region
          %s452 = ssub.s32 256, 256
          %453 = vsyncadd [#allocation7], %s452
          %s454 = sshll.u32 [#allocation6], 4
          %s455 = int_to_ptr.vmem [resolvable:$true] %s454
          %460 = dma.hbm_to_vmem [thread:$0]  %s11, 256, %s455, [#allocation7], 128, 128, 8
        $region56: #{graformer_mha.1} parent=11 // pred_fallthru
          _
        // Predicated region
        $region57: #{graformer_mha.1} parent=11 // pred_check
          %p461 = pneg %p319
        $region58: #{graformer_mha.1} parent=11 // pred_check_branch
          %463 = sbr.rel (%p461) target = $region60
        $region59: #{graformer_mha.1} parent=11 // pred_region
          _
        $region60: #{graformer_mha.1} parent=11 // pred_fallthru
          _
      $region12: #{graformer_mha.1} parent=5 // pred_fallthru
        _
      %p464 = scmp.lt.s32.totalorder %s29, 2
      // Predicated region
      $region61: #{graformer_mha.1} parent=5 // pred_check
        %p465 = pneg %p464
      $region62: #{graformer_mha.1} parent=5 // pred_check_branch
        %467 = sbr.rel (%p465) target = $region64
      $region63: #{graformer_mha.1} parent=5 // pred_region
        // Predicated region
        $region65: #{graformer_mha.1} parent=63 // pred_check
          %p468 = pneg %p61
        $region66: #{graformer_mha.1} parent=63 // pred_check_branch
          %470 = sbr.rel (%p468) target = $region68
        $region67: #{graformer_mha.1} parent=63 // pred_region
          %p471 = scmp.lt.s32.totalorder %s36, 1
          %s472 = scalar_select %p471, %s36, 1
          %s473 = smul.addr %s472, 8
          %s474 = scalar_lea.vmem %s0, %s473
        $region68: #{graformer_mha.1} parent=63 // pred_fallthru
          _
      $region64: #{graformer_mha.1} parent=5 // pred_fallthru
        _
      %p475 = scmp.le.s32.totalorder 1, %s29
      %p476 = scmp.lt.s32.totalorder %s29, 3
      %p477 = pnand %p475, %p476
      %p478 = pneg %p477
      // Predicated region
      $region69: #{graformer_mha.1} parent=5 // pred_check
        _
      $region70: #{graformer_mha.1} parent=5 // pred_check_branch
        %480 = sbr.rel (%p477) target = $region72
      $region71: #{graformer_mha.1} parent=5 // pred_region
        %s481 = ssub.s32 %s29, 1
        // Predicated region
        $region73: #{graformer_mha.1} parent=71 // pred_check
          %p482 = pneg %p298
        $region74: #{graformer_mha.1} parent=71 // pred_check_branch
          %484 = sbr.rel (%p482) target = $region76
        $region75: #{graformer_mha.1} parent=71 // pred_region
          %485 = dma.done [#allocation7], 256
        $region76: #{graformer_mha.1} parent=71 // pred_fallthru
          _
        %p486 = scmp.lt.s32.totalorder %s38, 1
        %s487 = scalar_select %p486, %s38, 1
        %s488 = smul.addr %s487, 8
        %s489 = scalar_lea.vmem %s0, %s488
        %p490 = pneg %p67
        %p491 = pneg %p64
        %p492 = pneg %p88
        %p493 = pneg %p85
        %p494 = pneg %p109
        %p495 = pneg %p106
        %p496 = pneg %p130
        %p497 = pneg %p127
        %p498 = pneg %p151
        %p499 = pneg %p148
        %p500 = pneg %p172
        %p501 = pneg %p169
        %p502 = pneg %p193
        %p503 = pneg %p190
        %p504 = pneg %p214
        %p505 = pneg %p211
        %p506 = pneg %p235
        %p507 = pneg %p232
        %p508 = pneg %p256
        %p509 = pneg %p253
        %p510 = pneg %p277
        %p511 = pneg %p274
        %p512 = pneg %p298
        %p513 = pneg %p295
        %p514 = pneg %p319
        %p515 = pneg %p316
        %p516 = pneg %p347
        %p517 = pneg %p344
        %s518 = sand.u32 %s334, 1
        %s519 = scalar_lea.sflag [#allocation8], %s518
        %s520 = sand.u32 %s334, 1
        %s521 = smul.addr %s520, 8
        %s522 = scalar_lea.vmem [#allocation9], %s521
        %p523 = pneg %p375
        %p524 = pneg %p372
        %s525 = sand.u32 %s34, 1
        %s526 = scalar_lea.sflag [#allocation11], %s525
        %s527 = sand.u32 %s362, 1
        %s528 = smul.addr %s527, 32
        %s529 = scalar_lea.vmem [#allocation10], %s528
        %p530 = pneg %p403
        %p531 = pneg %p400
        %s532 = sand.u32 %s34, 1
        %s533 = scalar_lea.sflag [#allocation11], %s532
        %s534 = sand.u32 %s390, 1
        %s535 = smul.addr %s534, 32
        %s536 = scalar_lea.vmem [#allocation12], %s535
        %p537 = scmp.lt.s32.totalorder %s38, 1
        %s538 = scalar_select %p537, %s38, 1
        %s539 = smul.addr %s538, 8
        %s540 = scalar_lea.vmem %s0, %s539
        %p541 = scmp.eq.s32.totalorder %s39, 0
        // Predicated region
        $region77: #{graformer_mha.1} parent=71 // pred_check
          %p542 = pneg %p541
        $region78: #{graformer_mha.1} parent=71 // pred_check_branch
          %544 = sbr.rel (%p542) target = $region80
        $region79: #{graformer_mha.1} parent=71 // pred_region
          %v545 = vld [vmem:[%s1] sm:$0x3]
          %v546 = vld [vmem:[%s2] sm:$0x3]
          %v547 = vld [vmem:[%s3] sm:$0x3]
          loop: start=0, step=1, limit=8
          $region81: #{graformer_mha.1} parent=79 // loop_pre_header
            _
          $region82: #{graformer_mha.1} parent=79 // loop_header
            %s549 = sphi 0, %s553
            %p550 = scmp.ge.s32.totalorder %s549, 8
            %v554 = vphi 0.0, %v563
          $region83: #{graformer_mha.1} parent=79 // loop_header_branch
            %552 = sbr.rel (%p550) target = $region87
          $region84: #{graformer_mha.1} parent=79 // loop_body
            %s555 = scalar_lea.vmem %s540, %s549
            %v556 = vld [vmem:[%s555] sm:$0x1]
            %v557 = vmul.f32 %v545, %v554
            %v558 = vlaneseq
            %v559 = vshrl.u32 %v558, 7
            %v560 = vsub.s32 0, %v559
            %v561 = vrot.slane %v556, %v560
            %v562 = vmul.f32 %v546, %v561
            %v563 = vadd.f32 %v557, %v562
            %v564 = vmul.f32 %v547, %v563
            %vm565 = vcmask 123904
            %v566 = vsel %vm565, %v564, 0.0
            %v567 = vrot.slane %v566, 4
            %v568 = vadd.f32 %v566, %v567
            %v569 = vrot.slane %v568, 2
            %v570 = vadd.f32 %v568, %v569
            %v571 = vrot.slane %v570, 1
            %v572 = vadd.f32 %v570, %v571
            %s573 = scalar_lea.vmem [#allocation2], %s549
            %vm574 = vcmask 122880
            %575 = vst.msk [vmem:[%s573] sm:$0x1] %vm574, %v572
          $region85: #{graformer_mha.1} parent=79 // loop_footer
            %s553 = sadd.s32 1, %s549
          $region86: #{graformer_mha.1} parent=79 // loop_footer_branch
            %548 = sbr.rel target = $region82
          $region87: #{graformer_mha.1} parent=79 // loop_exit
            _
          %v576 = vld [vmem:[%s540] sm:$0xff]
          %v577 = vld [vmem:[#allocation2] sm:$0xff]
          %v578 = vld [vmem:[%s4] sm:$0x1]
          %v580 = vlaneseq
          %v581 = vshrl.u32 %v580, 7
          %v582 = vsub.s32 0, %v581
          %v583 = vrot.slane %v578, %v582
          %v585 = vmul.f32 %v576, %v583
          %v586 = vadd.f32 %v577, %v585
          %v587 = vxor.u32 %v586, 2147483648
          %v588 = vmul.f32 %v587, 1.442695
          %v589 = vpow.pop %v588
          %v590 = vadd.f32 %v589, 1.0
          %v591 = vrcp.pop %v590
          %v592 = vmul.f32 1.0, %v591
          %v593 = vmul.f32 %v586, %v592
          %vm594 = vcmask 130048
          %595 = vst.msk [vmem:[#allocation2] sm:$0xff] %vm594, %v593
          %v596 = vld [vmem:[%s7] sm:$0xff]
          %v597 = vld [vmem:[%s7 + $0x8] sm:$0xff]
          %v598 = vld [vmem:[%s8] sm:$0x1]
          %v600 = vlaneseq
          %v601 = vshrl.u32 %v600, 7
          %v602 = vsub.s32 0, %v601
          %v603 = vrot.slane %v598, %v602
          %v606 = vsel %vm594, %v593, 0
          %608 = vmatprep.subr.mxu0 0.0
          %609 = vmatpush1.msra.mxu0 %v596
          %610 = vmatprep.subr.mxu0 0.0
          %611 = vmatpush1.msra.mxu0 %v597
          %612 = vmatprep.subr.mxu0 0.0
          %613 = vmatpush1.msra.mxu0 0.0
          %614 = vmatprep.subr.mxu0 0.0
          %615 = vmatpush1.msra.mxu0 0.0
          %616 = vmatprep.subr.mxu0 0.0
          %617 = vmatpush1.msra.mxu0 0.0
          %618 = vmatprep.subr.mxu0 0.0
          %619 = vmatpush1.msra.mxu0 0.0
          %620 = vmatprep.subr.mxu0 0.0
          %621 = vmatpush1.msra.mxu0 0.0
          %622 = vmatprep.subr.mxu0 0.0
          %623 = vmatpush1.msra.mxu0 0.0
          %624 = vmatprep.subr.mxu0 0.0
          %625 = vmatpush1.msra.mxu0 0.0
          %626 = vmatprep.subr.mxu0 0.0
          %627 = vmatpush1.msra.mxu0 0.0
          %628 = vmatprep.subr.mxu0 0.0
          %629 = vmatpush1.msra.mxu0 0.0
          %630 = vmatprep.subr.mxu0 0.0
          %631 = vmatpush1.msra.mxu0 0.0
          %632 = vmatprep.subr.mxu0 0.0
          %633 = vmatpush1.msra.mxu0 0.0
          %634 = vmatprep.subr.mxu0 0.0
          %635 = vmatpush1.msra.mxu0 0.0
          %636 = vmatprep.subr.mxu0 0.0
          %637 = vmatpush1.msra.mxu0 0.0
          %638 = vmatprep.subr.mxu0 0.0
          %639 = vmatpush1.msra.mxu0 0.0
          %640 = vmatprep.subr.mxu0 0.0
          %641 = vmatpush1.msra.mxu0 0.0
          %642 = vmatprep.subr.mxu0 0.0
          %643 = vmatpush1.msra.mxu0 0.0
          %644 = vmatprep.subr.mxu0 0.0
          %645 = vmatpush1.msra.mxu0 0.0
          %646 = vmatprep.subr.mxu0 0.0
          %647 = vmatpush1.msra.mxu0 0.0
          %648 = vmatprep.subr.mxu0 0.0
          %649 = vmatpush1.msra.mxu0 0.0
          %650 = vmatprep.subr.mxu0 0.0
          %651 = vmatpush1.msra.mxu0 0.0
          %652 = vmatprep.subr.mxu0 0.0
          %653 = vmatpush1.msra.mxu0 0.0
          %654 = vmatprep.subr.mxu0 0.0
          %655 = vmatpush1.msra.mxu0 0.0
          %656 = vmatprep.subr.mxu0 0.0
          %657 = vmatpush1.msra.mxu0 0.0
          %658 = vmatprep.subr.mxu0 0.0
          %659 = vmatpush1.msra.mxu0 0.0
          %660 = vmatprep.subr.mxu0 0.0
          %661 = vmatpush1.msra.mxu0 0.0
          %662 = vmatprep.subr.mxu0 0.0
          %663 = vmatpush1.msra.mxu0 0.0
          %664 = vmatprep.subr.mxu0 0.0
          %665 = vmatpush1.msra.mxu0 0.0
          %666 = vmatprep.subr.mxu0 0.0
          %667 = vmatpush1.msra.mxu0 0.0
          %668 = vmatprep.subr.mxu0 0.0
          %669 = vmatpush1.msra.mxu0 0.0
          %670 = vmatprep.subr.mxu0 0.0
          %671 = vmatpush1.msra.mxu0 0.0
          %672 = vmatprep.mubr.f32.mxu0 0.0
          %673 = vmatmul.mubr.f32.gmra.mrb[0].mxu0 %v606
          %v674 = vpop.f32.mrb[0].mxu0
          %v675 = vadd.f32 %v603, %v674
          %v676 = vpop.f32.mrb[0].mxu0
          %677 = vdwg.mxu0
          %678 = vst.msk [vmem:[#allocation3] sm:$0xff] %vm594, %v675
          %v679 = vld [vmem:[%s540] sm:$0xff]
          %v680 = vld [vmem:[%s9] sm:$0xff]
          %v681 = vld [vmem:[%s9 + $0x8] sm:$0xff]
          %v682 = vld [vmem:[%s10] sm:$0x1]
          %v684 = vlaneseq
          %v685 = vshrl.u32 %v684, 7
          %v686 = vsub.s32 0, %v685
          %v687 = vrot.slane %v682, %v686
          %v690 = vsel %vm594, %v679, 0
          %692 = vmatprep.subr.mxu0 0.0
          %693 = vmatpush1.msra.mxu0 %v680
          %694 = vmatprep.subr.mxu0 0.0
          %695 = vmatpush1.msra.mxu0 %v681
          %696 = vmatprep.subr.mxu0 0.0
          %697 = vmatpush1.msra.mxu0 0.0
          %698 = vmatprep.subr.mxu0 0.0
          %699 = vmatpush1.msra.mxu0 0.0
          %700 = vmatprep.subr.mxu0 0.0
          %701 = vmatpush1.msra.mxu0 0.0
          %702 = vmatprep.subr.mxu0 0.0
          %703 = vmatpush1.msra.mxu0 0.0
          %704 = vmatprep.subr.mxu0 0.0
          %705 = vmatpush1.msra.mxu0 0.0
          %706 = vmatprep.subr.mxu0 0.0
          %707 = vmatpush1.msra.mxu0 0.0
          %708 = vmatprep.subr.mxu0 0.0
          %709 = vmatpush1.msra.mxu0 0.0
          %710 = vmatprep.subr.mxu0 0.0
          %711 = vmatpush1.msra.mxu0 0.0
          %712 = vmatprep.subr.mxu0 0.0
          %713 = vmatpush1.msra.mxu0 0.0
          %714 = vmatprep.subr.mxu0 0.0
          %715 = vmatpush1.msra.mxu0 0.0
          %716 = vmatprep.subr.mxu0 0.0
          %717 = vmatpush1.msra.mxu0 0.0
          %718 = vmatprep.subr.mxu0 0.0
          %719 = vmatpush1.msra.mxu0 0.0
          %720 = vmatprep.subr.mxu0 0.0
          %721 = vmatpush1.msra.mxu0 0.0
          %722 = vmatprep.subr.mxu0 0.0
          %723 = vmatpush1.msra.mxu0 0.0
          %724 = vmatprep.subr.mxu0 0.0
          %725 = vmatpush1.msra.mxu0 0.0
          %726 = vmatprep.subr.mxu0 0.0
          %727 = vmatpush1.msra.mxu0 0.0
          %728 = vmatprep.subr.mxu0 0.0
          %729 = vmatpush1.msra.mxu0 0.0
          %730 = vmatprep.subr.mxu0 0.0
          %731 = vmatpush1.msra.mxu0 0.0
          %732 = vmatprep.subr.mxu0 0.0
          %733 = vmatpush1.msra.mxu0 0.0
          %734 = vmatprep.subr.mxu0 0.0
          %735 = vmatpush1.msra.mxu0 0.0
          %736 = vmatprep.subr.mxu0 0.0
          %737 = vmatpush1.msra.mxu0 0.0
          %738 = vmatprep.subr.mxu0 0.0
          %739 = vmatpush1.msra.mxu0 0.0
          %740 = vmatprep.subr.mxu0 0.0
          %741 = vmatpush1.msra.mxu0 0.0
          %742 = vmatprep.subr.mxu0 0.0
          %743 = vmatpush1.msra.mxu0 0.0
          %744 = vmatprep.subr.mxu0 0.0
          %745 = vmatpush1.msra.mxu0 0.0
          %746 = vmatprep.subr.mxu0 0.0
          %747 = vmatpush1.msra.mxu0 0.0
          %748 = vmatprep.subr.mxu0 0.0
          %749 = vmatpush1.msra.mxu0 0.0
          %750 = vmatprep.subr.mxu0 0.0
          %751 = vmatpush1.msra.mxu0 0.0
          %752 = vmatprep.subr.mxu0 0.0
          %753 = vmatpush1.msra.mxu0 0.0
          %754 = vmatprep.subr.mxu0 0.0
          %755 = vmatpush1.msra.mxu0 0.0
          %756 = vmatprep.mubr.f32.mxu0 0.0
          %757 = vmatmul.mubr.f32.gmra.mrb[0].mxu0 %v690
          %v758 = vpop.f32.mrb[0].mxu0
          %v759 = vadd.f32 %v687, %v758
          %v760 = vpop.f32.mrb[0].mxu0
          %761 = vdwg.mxu0
          %762 = vst.msk [vmem:[#allocation4] sm:$0xff] %vm594, %v759
        $region80: #{graformer_mha.1} parent=71 // pred_fallthru
          _
        %s763 = smul.u32 %s39, 8
        %s764 = scalar_lea.vmem [#allocation2], %s763
        %v765 = vld [vmem:[%s764] sm:$0xff]
        %v766 = vld [vmem:[%s5] sm:$0xff]
        %v767 = vld [vmem:[%s5 + $0x8] sm:$0xff]
        %v768 = vld [vmem:[%s6] sm:$0x1]
        %v770 = vlaneseq
        %v771 = vshrl.u32 %v770, 7
        %v772 = vsub.s32 0, %v771
        %v773 = vrot.slane %v768, %v772
        %vm775 = vcmask 130048
        %v777 = vsel %vm775, %v765, 0
        %779 = vmatprep.subr.mxu0 0.0
        %780 = vmatpush1.msra.mxu0 %v766
        %781 = vmatprep.subr.mxu0 0.0
        %782 = vmatpush1.msra.mxu0 %v767
        %783 = vmatprep.subr.mxu0 0.0
        %784 = vmatpush1.msra.mxu0 0.0
        %785 = vmatprep.subr.mxu0 0.0
        %786 = vmatpush1.msra.mxu0 0.0
        %787 = vmatprep.subr.mxu0 0.0
        %788 = vmatpush1.msra.mxu0 0.0
        %789 = vmatprep.subr.mxu0 0.0
        %790 = vmatpush1.msra.mxu0 0.0
        %791 = vmatprep.subr.mxu0 0.0
        %792 = vmatpush1.msra.mxu0 0.0
        %793 = vmatprep.subr.mxu0 0.0
        %794 = vmatpush1.msra.mxu0 0.0
        %795 = vmatprep.subr.mxu0 0.0
        %796 = vmatpush1.msra.mxu0 0.0
        %797 = vmatprep.subr.mxu0 0.0
        %798 = vmatpush1.msra.mxu0 0.0
        %799 = vmatprep.subr.mxu0 0.0
        %800 = vmatpush1.msra.mxu0 0.0
        %801 = vmatprep.subr.mxu0 0.0
        %802 = vmatpush1.msra.mxu0 0.0
        %803 = vmatprep.subr.mxu0 0.0
        %804 = vmatpush1.msra.mxu0 0.0
        %805 = vmatprep.subr.mxu0 0.0
        %806 = vmatpush1.msra.mxu0 0.0
        %807 = vmatprep.subr.mxu0 0.0
        %808 = vmatpush1.msra.mxu0 0.0
        %809 = vmatprep.subr.mxu0 0.0
        %810 = vmatpush1.msra.mxu0 0.0
        %811 = vmatprep.subr.mxu0 0.0
        %812 = vmatpush1.msra.mxu0 0.0
        %813 = vmatprep.subr.mxu0 0.0
        %814 = vmatpush1.msra.mxu0 0.0
        %815 = vmatprep.subr.mxu0 0.0
        %816 = vmatpush1.msra.mxu0 0.0
        %817 = vmatprep.subr.mxu0 0.0
        %818 = vmatpush1.msra.mxu0 0.0
        %819 = vmatprep.subr.mxu0 0.0
        %820 = vmatpush1.msra.mxu0 0.0
        %821 = vmatprep.subr.mxu0 0.0
        %822 = vmatpush1.msra.mxu0 0.0
        %823 = vmatprep.subr.mxu0 0.0
        %824 = vmatpush1.msra.mxu0 0.0
        %825 = vmatprep.subr.mxu0 0.0
        %826 = vmatpush1.msra.mxu0 0.0
        %827 = vmatprep.subr.mxu0 0.0
        %828 = vmatpush1.msra.mxu0 0.0
        %829 = vmatprep.subr.mxu0 0.0
        %830 = vmatpush1.msra.mxu0 0.0
        %831 = vmatprep.subr.mxu0 0.0
        %832 = vmatpush1.msra.mxu0 0.0
        %833 = vmatprep.subr.mxu0 0.0
        %834 = vmatpush1.msra.mxu0 0.0
        %835 = vmatprep.subr.mxu0 0.0
        %836 = vmatpush1.msra.mxu0 0.0
        %837 = vmatprep.subr.mxu0 0.0
        %838 = vmatpush1.msra.mxu0 0.0
        %839 = vmatprep.subr.mxu0 0.0
        %840 = vmatpush1.msra.mxu0 0.0
        %841 = vmatprep.subr.mxu0 0.0
        %842 = vmatpush1.msra.mxu0 0.0
        %843 = vmatprep.mubr.f32.mxu0 0.0
        %844 = vmatmul.mubr.f32.gmra.mrb[0].mxu0 %v777
        %v845 = vpop.f32.mrb[0].mxu0
        %v846 = vadd.f32 %v773, %v845
        %v847 = vpop.f32.mrb[0].mxu0
        %848 = vdwg.mxu0
        %v849 = vld [vmem:[#allocation3] sm:$0xff]
        %v850 = vld [vmem:[#allocation4] sm:$0xff]
        %vm851 = vcmask 31744
        %v853 = vsel %vm851, %v846, 0
        %v856 = vsel %vm851, %v849, 0
        %858 = vmatprep.subr.mxu0 0.0
        %859 = vmatpush1.xpose.msra.mxu0 %v856
        %860 = vmatprep.subr.mxu0 0.0
        %861 = vmatpush1.xpose.msra.mxu0 0.0
        %862 = vmatprep.subr.mxu0 0.0
        %863 = vmatpush1.xpose.msra.mxu0 0.0
        %864 = vmatprep.subr.mxu0 0.0
        %865 = vmatpush1.xpose.msra.mxu0 0.0
        %866 = vmatprep.subr.mxu0 0.0
        %867 = vmatpush1.xpose.msra.mxu0 0.0
        %868 = vmatprep.subr.mxu0 0.0
        %869 = vmatpush1.xpose.msra.mxu0 0.0
        %870 = vmatprep.subr.mxu0 0.0
        %871 = vmatpush1.xpose.msra.mxu0 0.0
        %872 = vmatprep.subr.mxu0 0.0
        %873 = vmatpush1.xpose.msra.mxu0 0.0
        %874 = vmatprep.subr.mxu0 0.0
        %875 = vmatpush1.xpose.msra.mxu0 0.0
        %876 = vmatprep.subr.mxu0 0.0
        %877 = vmatpush1.xpose.msra.mxu0 0.0
        %878 = vmatprep.subr.mxu0 0.0
        %879 = vmatpush1.xpose.msra.mxu0 0.0
        %880 = vmatprep.subr.mxu0 0.0
        %881 = vmatpush1.xpose.msra.mxu0 0.0
        %882 = vmatprep.subr.mxu0 0.0
        %883 = vmatpush1.xpose.msra.mxu0 0.0
        %884 = vmatprep.subr.mxu0 0.0
        %885 = vmatpush1.xpose.msra.mxu0 0.0
        %886 = vmatprep.subr.mxu0 0.0
        %887 = vmatpush1.xpose.msra.mxu0 0.0
        %888 = vmatprep.subr.mxu0 0.0
        %889 = vmatpush1.xpose.msra.mxu0 0.0
        %890 = vmatprep.subr.mxu0 0.0
        %891 = vmatpush1.xpose.msra.mxu0 0.0
        %892 = vmatprep.subr.mxu0 0.0
        %893 = vmatpush1.xpose.msra.mxu0 0.0
        %894 = vmatprep.subr.mxu0 0.0
        %895 = vmatpush1.xpose.msra.mxu0 0.0
        %896 = vmatprep.subr.mxu0 0.0
        %897 = vmatpush1.xpose.msra.mxu0 0.0
        %898 = vmatprep.subr.mxu0 0.0
        %899 = vmatpush1.xpose.msra.mxu0 0.0
        %900 = vmatprep.subr.mxu0 0.0
        %901 = vmatpush1.xpose.msra.mxu0 0.0
        %902 = vmatprep.subr.mxu0 0.0
        %903 = vmatpush1.xpose.msra.mxu0 0.0
        %904 = vmatprep.subr.mxu0 0.0
        %905 = vmatpush1.xpose.msra.mxu0 0.0
        %906 = vmatprep.subr.mxu0 0.0
        %907 = vmatpush1.xpose.msra.mxu0 0.0
        %908 = vmatprep.subr.mxu0 0.0
        %909 = vmatpush1.xpose.msra.mxu0 0.0
        %910 = vmatprep.subr.mxu0 0.0
        %911 = vmatpush1.xpose.msra.mxu0 0.0
        %912 = vmatprep.subr.mxu0 0.0
        %913 = vmatpush1.xpose.msra.mxu0 0.0
        %914 = vmatprep.subr.mxu0 0.0
        %915 = vmatpush1.xpose.msra.mxu0 0.0
        %916 = vmatprep.subr.mxu0 0.0
        %917 = vmatpush1.xpose.msra.mxu0 0.0
        %918 = vmatprep.subr.mxu0 0.0
        %919 = vmatpush1.xpose.msra.mxu0 0.0
        %920 = vmatprep.subr.mxu0 0.0
        %921 = vmatpush1.xpose.msra.mxu0 0.0
        %922 = vmatprep.mubr.f32.mxu0 0.0
        %923 = vmatmul.mubr.f32.gmra.mrb[0].mxu0 %v853
        %v924 = vpop.f32.mrb[0].mxu0
        %v925 = vadd.f32 0.0, %v924
        %v926 = vpop.f32.mrb[0].mxu0
        %927 = vdwg.mxu0
        %vm928 = vcmask 64512
        %v929 = vsel %vm928, %v925, -inf
        %930 = vmax.xlane.f32.xlu0 %v929
        %v931 = vpop.xlane.xlu0 %930
        %v932 = vsub.f32 %v925, %v931
        %v933 = vmul.f32 %v932, 1.442695
        %v934 = vpow.pop %v933
        %v935 = vsel %vm928, %v934, 0.0
        %936 = vadd.xlane.f32.xlu0 %v935
        %v937 = vpop.xlane.xlu0 %936
        %v938 = vrcp.pop %v937
        %v939 = vmul.f32 %v934, %v938
        %940 = vst.msk [vmem:[%s536] sm:$0xff] %vm928, %v925
        %941 = vst.msk [vmem:[%s529] sm:$0xff] %vm928, %v939
        %v943 = vsel %vm928, %v939, 0
        %945 = vmatprep.subr.mxu0 0.0
        %946 = vmatpush1.msra.mxu0 %v850
        %947 = vmatprep.subr.mxu0 0.0
        %948 = vmatpush1.msra.mxu0 0.0
        %949 = vmatprep.subr.mxu0 0.0
        %950 = vmatpush1.msra.mxu0 0.0
        %951 = vmatprep.subr.mxu0 0.0
        %952 = vmatpush1.msra.mxu0 0.0
        %953 = vmatprep.subr.mxu0 0.0
        %954 = vmatpush1.msra.mxu0 0.0
        %955 = vmatprep.subr.mxu0 0.0
        %956 = vmatpush1.msra.mxu0 0.0
        %957 = vmatprep.subr.mxu0 0.0
        %958 = vmatpush1.msra.mxu0 0.0
        %959 = vmatprep.subr.mxu0 0.0
        %960 = vmatpush1.msra.mxu0 0.0
        %961 = vmatprep.subr.mxu0 0.0
        %962 = vmatpush1.msra.mxu0 0.0
        %963 = vmatprep.subr.mxu0 0.0
        %964 = vmatpush1.msra.mxu0 0.0
        %965 = vmatprep.subr.mxu0 0.0
        %966 = vmatpush1.msra.mxu0 0.0
        %967 = vmatprep.subr.mxu0 0.0
        %968 = vmatpush1.msra.mxu0 0.0
        %969 = vmatprep.subr.mxu0 0.0
        %970 = vmatpush1.msra.mxu0 0.0
        %971 = vmatprep.subr.mxu0 0.0
        %972 = vmatpush1.msra.mxu0 0.0
        %973 = vmatprep.subr.mxu0 0.0
        %974 = vmatpush1.msra.mxu0 0.0
        %975 = vmatprep.subr.mxu0 0.0
        %976 = vmatpush1.msra.mxu0 0.0
        %977 = vmatprep.subr.mxu0 0.0
        %978 = vmatpush1.msra.mxu0 0.0
        %979 = vmatprep.subr.mxu0 0.0
        %980 = vmatpush1.msra.mxu0 0.0
        %981 = vmatprep.subr.mxu0 0.0
        %982 = vmatpush1.msra.mxu0 0.0
        %983 = vmatprep.subr.mxu0 0.0
        %984 = vmatpush1.msra.mxu0 0.0
        %985 = vmatprep.subr.mxu0 0.0
        %986 = vmatpush1.msra.mxu0 0.0
        %987 = vmatprep.subr.mxu0 0.0
        %988 = vmatpush1.msra.mxu0 0.0
        %989 = vmatprep.subr.mxu0 0.0
        %990 = vmatpush1.msra.mxu0 0.0
        %991 = vmatprep.subr.mxu0 0.0
        %992 = vmatpush1.msra.mxu0 0.0
        %993 = vmatprep.subr.mxu0 0.0
        %994 = vmatpush1.msra.mxu0 0.0
        %995 = vmatprep.subr.mxu0 0.0
        %996 = vmatpush1.msra.mxu0 0.0
        %997 = vmatprep.subr.mxu0 0.0
        %998 = vmatpush1.msra.mxu0 0.0
        %999 = vmatprep.subr.mxu0 0.0
        %1000 = vmatpush1.msra.mxu0 0.0
        %1001 = vmatprep.subr.mxu0 0.0
        %1002 = vmatpush1.msra.mxu0 0.0
        %1003 = vmatprep.subr.mxu0 0.0
        %1004 = vmatpush1.msra.mxu0 0.0
        %1005 = vmatprep.subr.mxu0 0.0
        %1006 = vmatpush1.msra.mxu0 0.0
        %1007 = vmatprep.subr.mxu0 0.0
        %1008 = vmatpush1.msra.mxu0 0.0
        %1009 = vmatprep.mubr.f32.mxu0 0.0
        %1010 = vmatmul.mubr.f32.gmra.mrb[0].mxu0 %v943
        %v1011 = vpop.f32.mrb[0].mxu0
        %v1012 = vadd.f32 0.0, %v1011
        %v1013 = vpop.f32.mrb[0].mxu0
        %1014 = vdwg.mxu0
        %1015 = vst.msk [vmem:[#allocation5] sm:$0xff] %vm851, %v1012
        %1016 = vrot.lane.b32.xlu0 %v846, 124
        %v1017 = vpop.permute.xlu0 %1016
        %1018 = vrot.lane.b32.xlu0 %v849, 124
        %v1019 = vpop.permute.xlu0 %1018
        %v1020 = vsel %vm851, %v1017, 0
        %v1022 = vsel %vm851, %v1019, 0
        %1024 = vmatprep.subr.mxu0 0.0
        %1025 = vmatpush1.xpose.msra.mxu0 %v1022
        %1026 = vmatprep.subr.mxu0 0.0
        %1027 = vmatpush1.xpose.msra.mxu0 0.0
        %1028 = vmatprep.subr.mxu0 0.0
        %1029 = vmatpush1.xpose.msra.mxu0 0.0
        %1030 = vmatprep.subr.mxu0 0.0
        %1031 = vmatpush1.xpose.msra.mxu0 0.0
        %1032 = vmatprep.subr.mxu0 0.0
        %1033 = vmatpush1.xpose.msra.mxu0 0.0
        %1034 = vmatprep.subr.mxu0 0.0
        %1035 = vmatpush1.xpose.msra.mxu0 0.0
        %1036 = vmatprep.subr.mxu0 0.0
        %1037 = vmatpush1.xpose.msra.mxu0 0.0
        %1038 = vmatprep.subr.mxu0 0.0
        %1039 = vmatpush1.xpose.msra.mxu0 0.0
        %1040 = vmatprep.subr.mxu0 0.0
        %1041 = vmatpush1.xpose.msra.mxu0 0.0
        %1042 = vmatprep.subr.mxu0 0.0
        %1043 = vmatpush1.xpose.msra.mxu0 0.0
        %1044 = vmatprep.subr.mxu0 0.0
        %1045 = vmatpush1.xpose.msra.mxu0 0.0
        %1046 = vmatprep.subr.mxu0 0.0
        %1047 = vmatpush1.xpose.msra.mxu0 0.0
        %1048 = vmatprep.subr.mxu0 0.0
        %1049 = vmatpush1.xpose.msra.mxu0 0.0
        %1050 = vmatprep.subr.mxu0 0.0
        %1051 = vmatpush1.xpose.msra.mxu0 0.0
        %1052 = vmatprep.subr.mxu0 0.0
        %1053 = vmatpush1.xpose.msra.mxu0 0.0
        %1054 = vmatprep.subr.mxu0 0.0
        %1055 = vmatpush1.xpose.msra.mxu0 0.0
        %1056 = vmatprep.subr.mxu0 0.0
        %1057 = vmatpush1.xpose.msra.mxu0 0.0
        %1058 = vmatprep.subr.mxu0 0.0
        %1059 = vmatpush1.xpose.msra.mxu0 0.0
        %1060 = vmatprep.subr.mxu0 0.0
        %1061 = vmatpush1.xpose.msra.mxu0 0.0
        %1062 = vmatprep.subr.mxu0 0.0
        %1063 = vmatpush1.xpose.msra.mxu0 0.0
        %1064 = vmatprep.subr.mxu0 0.0
        %1065 = vmatpush1.xpose.msra.mxu0 0.0
        %1066 = vmatprep.subr.mxu0 0.0
        %1067 = vmatpush1.xpose.msra.mxu0 0.0
        %1068 = vmatprep.subr.mxu0 0.0
        %1069 = vmatpush1.xpose.msra.mxu0 0.0
        %1070 = vmatprep.subr.mxu0 0.0
        %1071 = vmatpush1.xpose.msra.mxu0 0.0
        %1072 = vmatprep.subr.mxu0 0.0
        %1073 = vmatpush1.xpose.msra.mxu0 0.0
        %1074 = vmatprep.subr.mxu0 0.0
        %1075 = vmatpush1.xpose.msra.mxu0 0.0
        %1076 = vmatprep.subr.mxu0 0.0
        %1077 = vmatpush1.xpose.msra.mxu0 0.0
        %1078 = vmatprep.subr.mxu0 0.0
        %1079 = vmatpush1.xpose.msra.mxu0 0.0
        %1080 = vmatprep.subr.mxu0 0.0
        %1081 = vmatpush1.xpose.msra.mxu0 0.0
        %1082 = vmatprep.subr.mxu0 0.0
        %1083 = vmatpush1.xpose.msra.mxu0 0.0
        %1084 = vmatprep.subr.mxu0 0.0
        %1085 = vmatpush1.xpose.msra.mxu0 0.0
        %1086 = vmatprep.subr.mxu0 0.0
        %1087 = vmatpush1.xpose.msra.mxu0 0.0
        %1088 = vmatprep.mubr.f32.mxu0 0.0
        %1089 = vmatmul.mubr.f32.gmra.mrb[0].mxu0 %v1020
        %v1090 = vpop.f32.mrb[0].mxu0
        %v1091 = vadd.f32 0.0, %v1090
        %v1092 = vpop.f32.mrb[0].mxu0
        %1093 = vdwg.mxu0
        %v1094 = vsel %vm928, %v1091, -inf
        %1095 = vmax.xlane.f32.xlu0 %v1094
        %v1096 = vpop.xlane.xlu0 %1095
        %v1097 = vsub.f32 %v1091, %v1096
        %v1098 = vmul.f32 %v1097, 1.442695
        %v1099 = vpow.pop %v1098
        %v1100 = vsel %vm928, %v1099, 0.0
        %1101 = vadd.xlane.f32.xlu0 %v1100
        %v1102 = vpop.xlane.xlu0 %1101
        %v1103 = vrcp.pop %v1102
        %v1104 = vmul.f32 %v1099, %v1103
        %s1105 = scalar_lea.vmem %s536, 8 [#allocation12]
        %1106 = vst.msk [vmem:[%s1105] sm:$0xff] %vm928, %v1091
        %s1107 = scalar_lea.vmem %s529, 8 [#allocation10]
        %1108 = vst.msk [vmem:[%s1107] sm:$0xff] %vm928, %v1104
        %1110 = vrot.lane.b32.xlu0 %v850, 124
        %v1111 = vpop.permute.xlu0 %1110
        %v1114 = vsel %vm928, %v1104, 0
        %1116 = vmatprep.subr.mxu0 0.0
        %1117 = vmatpush1.msra.mxu0 %v1111
        %1118 = vmatprep.subr.mxu0 0.0
        %1119 = vmatpush1.msra.mxu0 0.0
        %1120 = vmatprep.subr.mxu0 0.0
        %1121 = vmatpush1.msra.mxu0 0.0
        %1122 = vmatprep.subr.mxu0 0.0
        %1123 = vmatpush1.msra.mxu0 0.0
        %1124 = vmatprep.subr.mxu0 0.0
        %1125 = vmatpush1.msra.mxu0 0.0
        %1126 = vmatprep.subr.mxu0 0.0
        %1127 = vmatpush1.msra.mxu0 0.0
        %1128 = vmatprep.subr.mxu0 0.0
        %1129 = vmatpush1.msra.mxu0 0.0
        %1130 = vmatprep.subr.mxu0 0.0
        %1131 = vmatpush1.msra.mxu0 0.0
        %1132 = vmatprep.subr.mxu0 0.0
        %1133 = vmatpush1.msra.mxu0 0.0
        %1134 = vmatprep.subr.mxu0 0.0
        %1135 = vmatpush1.msra.mxu0 0.0
        %1136 = vmatprep.subr.mxu0 0.0
        %1137 = vmatpush1.msra.mxu0 0.0
        %1138 = vmatprep.subr.mxu0 0.0
        %1139 = vmatpush1.msra.mxu0 0.0
        %1140 = vmatprep.subr.mxu0 0.0
        %1141 = vmatpush1.msra.mxu0 0.0
        %1142 = vmatprep.subr.mxu0 0.0
        %1143 = vmatpush1.msra.mxu0 0.0
        %1144 = vmatprep.subr.mxu0 0.0
        %1145 = vmatpush1.msra.mxu0 0.0
        %1146 = vmatprep.subr.mxu0 0.0
        %1147 = vmatpush1.msra.mxu0 0.0
        %1148 = vmatprep.subr.mxu0 0.0
        %1149 = vmatpush1.msra.mxu0 0.0
        %1150 = vmatprep.subr.mxu0 0.0
        %1151 = vmatpush1.msra.mxu0 0.0
        %1152 = vmatprep.subr.mxu0 0.0
        %1153 = vmatpush1.msra.mxu0 0.0
        %1154 = vmatprep.subr.mxu0 0.0
        %1155 = vmatpush1.msra.mxu0 0.0
        %1156 = vmatprep.subr.mxu0 0.0
        %1157 = vmatpush1.msra.mxu0 0.0
        %1158 = vmatprep.subr.mxu0 0.0
        %1159 = vmatpush1.msra.mxu0 0.0
        %1160 = vmatprep.subr.mxu0 0.0
        %1161 = vmatpush1.msra.mxu0 0.0
        %1162 = vmatprep.subr.mxu0 0.0
        %1163 = vmatpush1.msra.mxu0 0.0
        %1164 = vmatprep.subr.mxu0 0.0
        %1165 = vmatpush1.msra.mxu0 0.0
        %1166 = vmatprep.subr.mxu0 0.0
        %1167 = vmatpush1.msra.mxu0 0.0
        %1168 = vmatprep.subr.mxu0 0.0
        %1169 = vmatpush1.msra.mxu0 0.0
        %1170 = vmatprep.subr.mxu0 0.0
        %1171 = vmatpush1.msra.mxu0 0.0
        %1172 = vmatprep.subr.mxu0 0.0
        %1173 = vmatpush1.msra.mxu0 0.0
        %1174 = vmatprep.subr.mxu0 0.0
        %1175 = vmatpush1.msra.mxu0 0.0
        %1176 = vmatprep.subr.mxu0 0.0
        %1177 = vmatpush1.msra.mxu0 0.0
        %1178 = vmatprep.subr.mxu0 0.0
        %1179 = vmatpush1.msra.mxu0 0.0
        %1180 = vmatprep.mubr.f32.mxu0 0.0
        %1181 = vmatmul.mubr.f32.gmra.mrb[0].mxu0 %v1114
        %v1182 = vpop.f32.mrb[0].mxu0
        %v1183 = vadd.f32 0.0, %v1182
        %v1184 = vpop.f32.mrb[0].mxu0
        %1185 = vdwg.mxu0
        %1187 = vrot.lane.b32.xlu0 %v1183, 4
        %v1188 = vpop.permute.xlu0 %1187
        %vm1190 = vcmask 64544
        %1191 = vst.msk [vmem:[#allocation5] sm:$0xff] %vm1190, %v1188
        %1192 = vrot.lane.b32.xlu0 %v846, 120
        %v1193 = vpop.permute.xlu0 %1192
        %1194 = vrot.lane.b32.xlu0 %v849, 120
        %v1195 = vpop.permute.xlu0 %1194
        %v1196 = vsel %vm851, %v1193, 0
        %v1198 = vsel %vm851, %v1195, 0
        %1200 = vmatprep.subr.mxu0 0.0
        %1201 = vmatpush1.xpose.msra.mxu0 %v1198
        %1202 = vmatprep.subr.mxu0 0.0
        %1203 = vmatpush1.xpose.msra.mxu0 0.0
        %1204 = vmatprep.subr.mxu0 0.0
        %1205 = vmatpush1.xpose.msra.mxu0 0.0
        %1206 = vmatprep.subr.mxu0 0.0
        %1207 = vmatpush1.xpose.msra.mxu0 0.0
        %1208 = vmatprep.subr.mxu0 0.0
        %1209 = vmatpush1.xpose.msra.mxu0 0.0
        %1210 = vmatprep.subr.mxu0 0.0
        %1211 = vmatpush1.xpose.msra.mxu0 0.0
        %1212 = vmatprep.subr.mxu0 0.0
        %1213 = vmatpush1.xpose.msra.mxu0 0.0
        %1214 = vmatprep.subr.mxu0 0.0
        %1215 = vmatpush1.xpose.msra.mxu0 0.0
        %1216 = vmatprep.subr.mxu0 0.0
        %1217 = vmatpush1.xpose.msra.mxu0 0.0
        %1218 = vmatprep.subr.mxu0 0.0
        %1219 = vmatpush1.xpose.msra.mxu0 0.0
        %1220 = vmatprep.subr.mxu0 0.0
        %1221 = vmatpush1.xpose.msra.mxu0 0.0
        %1222 = vmatprep.subr.mxu0 0.0
        %1223 = vmatpush1.xpose.msra.mxu0 0.0
        %1224 = vmatprep.subr.mxu0 0.0
        %1225 = vmatpush1.xpose.msra.mxu0 0.0
        %1226 = vmatprep.subr.mxu0 0.0
        %1227 = vmatpush1.xpose.msra.mxu0 0.0
        %1228 = vmatprep.subr.mxu0 0.0
        %1229 = vmatpush1.xpose.msra.mxu0 0.0
        %1230 = vmatprep.subr.mxu0 0.0
        %1231 = vmatpush1.xpose.msra.mxu0 0.0
        %1232 = vmatprep.subr.mxu0 0.0
        %1233 = vmatpush1.xpose.msra.mxu0 0.0
        %1234 = vmatprep.subr.mxu0 0.0
        %1235 = vmatpush1.xpose.msra.mxu0 0.0
        %1236 = vmatprep.subr.mxu0 0.0
        %1237 = vmatpush1.xpose.msra.mxu0 0.0
        %1238 = vmatprep.subr.mxu0 0.0
        %1239 = vmatpush1.xpose.msra.mxu0 0.0
        %1240 = vmatprep.subr.mxu0 0.0
        %1241 = vmatpush1.xpose.msra.mxu0 0.0
        %1242 = vmatprep.subr.mxu0 0.0
        %1243 = vmatpush1.xpose.msra.mxu0 0.0
        %1244 = vmatprep.subr.mxu0 0.0
        %1245 = vmatpush1.xpose.msra.mxu0 0.0
        %1246 = vmatprep.subr.mxu0 0.0
        %1247 = vmatpush1.xpose.msra.mxu0 0.0
        %1248 = vmatprep.subr.mxu0 0.0
        %1249 = vmatpush1.xpose.msra.mxu0 0.0
        %1250 = vmatprep.subr.mxu0 0.0
        %1251 = vmatpush1.xpose.msra.mxu0 0.0
        %1252 = vmatprep.subr.mxu0 0.0
        %1253 = vmatpush1.xpose.msra.mxu0 0.0
        %1254 = vmatprep.subr.mxu0 0.0
        %1255 = vmatpush1.xpose.msra.mxu0 0.0
        %1256 = vmatprep.subr.mxu0 0.0
        %1257 = vmatpush1.xpose.msra.mxu0 0.0
        %1258 = vmatprep.subr.mxu0 0.0
        %1259 = vmatpush1.xpose.msra.mxu0 0.0
        %1260 = vmatprep.subr.mxu0 0.0
        %1261 = vmatpush1.xpose.msra.mxu0 0.0
        %1262 = vmatprep.subr.mxu0 0.0
        %1263 = vmatpush1.xpose.msra.mxu0 0.0
        %1264 = vmatprep.mubr.f32.mxu0 0.0
        %1265 = vmatmul.mubr.f32.gmra.mrb[0].mxu0 %v1196
        %v1266 = vpop.f32.mrb[0].mxu0
        %v1267 = vadd.f32 0.0, %v1266
        %v1268 = vpop.f32.mrb[0].mxu0
        %1269 = vdwg.mxu0
        %v1270 = vsel %vm928, %v1267, -inf
        %1271 = vmax.xlane.f32.xlu0 %v1270
        %v1272 = vpop.xlane.xlu0 %1271
        %v1273 = vsub.f32 %v1267, %v1272
        %v1274 = vmul.f32 %v1273, 1.442695
        %v1275 = vpow.pop %v1274
        %v1276 = vsel %vm928, %v1275, 0.0
        %1277 = vadd.xlane.f32.xlu0 %v1276
        %v1278 = vpop.xlane.xlu0 %1277
        %v1279 = vrcp.pop %v1278
        %v1280 = vmul.f32 %v1275, %v1279
        %s1281 = scalar_lea.vmem %s536, 16 [#allocation12]
        %1282 = vst.msk [vmem:[%s1281] sm:$0xff] %vm928, %v1267
        %s1283 = scalar_lea.vmem %s529, 16 [#allocation10]
        %1284 = vst.msk [vmem:[%s1283] sm:$0xff] %vm928, %v1280
        %1285 = vrot.lane.b32.xlu0 %v850, 120
        %v1286 = vpop.permute.xlu0 %1285
        %v1289 = vsel %vm928, %v1280, 0
        %1291 = vmatprep.subr.mxu0 0.0
        %1292 = vmatpush1.msra.mxu0 %v1286
        %1293 = vmatprep.subr.mxu0 0.0
        %1294 = vmatpush1.msra.mxu0 0.0
        %1295 = vmatprep.subr.mxu0 0.0
        %1296 = vmatpush1.msra.mxu0 0.0
        %1297 = vmatprep.subr.mxu0 0.0
        %1298 = vmatpush1.msra.mxu0 0.0
        %1299 = vmatprep.subr.mxu0 0.0
        %1300 = vmatpush1.msra.mxu0 0.0
        %1301 = vmatprep.subr.mxu0 0.0
        %1302 = vmatpush1.msra.mxu0 0.0
        %1303 = vmatprep.subr.mxu0 0.0
        %1304 = vmatpush1.msra.mxu0 0.0
        %1305 = vmatprep.subr.mxu0 0.0
        %1306 = vmatpush1.msra.mxu0 0.0
        %1307 = vmatprep.subr.mxu0 0.0
        %1308 = vmatpush1.msra.mxu0 0.0
        %1309 = vmatprep.subr.mxu0 0.0
        %1310 = vmatpush1.msra.mxu0 0.0
        %1311 = vmatprep.subr.mxu0 0.0
        %1312 = vmatpush1.msra.mxu0 0.0
        %1313 = vmatprep.subr.mxu0 0.0
        %1314 = vmatpush1.msra.mxu0 0.0
        %1315 = vmatprep.subr.mxu0 0.0
        %1316 = vmatpush1.msra.mxu0 0.0
        %1317 = vmatprep.subr.mxu0 0.0
        %1318 = vmatpush1.msra.mxu0 0.0
        %1319 = vmatprep.subr.mxu0 0.0
        %1320 = vmatpush1.msra.mxu0 0.0
        %1321 = vmatprep.subr.mxu0 0.0
        %1322 = vmatpush1.msra.mxu0 0.0
        %1323 = vmatprep.subr.mxu0 0.0
        %1324 = vmatpush1.msra.mxu0 0.0
        %1325 = vmatprep.subr.mxu0 0.0
        %1326 = vmatpush1.msra.mxu0 0.0
        %1327 = vmatprep.subr.mxu0 0.0
        %1328 = vmatpush1.msra.mxu0 0.0
        %1329 = vmatprep.subr.mxu0 0.0
        %1330 = vmatpush1.msra.mxu0 0.0
        %1331 = vmatprep.subr.mxu0 0.0
        %1332 = vmatpush1.msra.mxu0 0.0
        %1333 = vmatprep.subr.mxu0 0.0
        %1334 = vmatpush1.msra.mxu0 0.0
        %1335 = vmatprep.subr.mxu0 0.0
        %1336 = vmatpush1.msra.mxu0 0.0
        %1337 = vmatprep.subr.mxu0 0.0
        %1338 = vmatpush1.msra.mxu0 0.0
        %1339 = vmatprep.subr.mxu0 0.0
        %1340 = vmatpush1.msra.mxu0 0.0
        %1341 = vmatprep.subr.mxu0 0.0
        %1342 = vmatpush1.msra.mxu0 0.0
        %1343 = vmatprep.subr.mxu0 0.0
        %1344 = vmatpush1.msra.mxu0 0.0
        %1345 = vmatprep.subr.mxu0 0.0
        %1346 = vmatpush1.msra.mxu0 0.0
        %1347 = vmatprep.subr.mxu0 0.0
        %1348 = vmatpush1.msra.mxu0 0.0
        %1349 = vmatprep.subr.mxu0 0.0
        %1350 = vmatpush1.msra.mxu0 0.0
        %1351 = vmatprep.subr.mxu0 0.0
        %1352 = vmatpush1.msra.mxu0 0.0
        %1353 = vmatprep.subr.mxu0 0.0
        %1354 = vmatpush1.msra.mxu0 0.0
        %1355 = vmatprep.mubr.f32.mxu0 0.0
        %1356 = vmatmul.mubr.f32.gmra.mrb[0].mxu0 %v1289
        %v1357 = vpop.f32.mrb[0].mxu0
        %v1358 = vadd.f32 0.0, %v1357
        %v1359 = vpop.f32.mrb[0].mxu0
        %1360 = vdwg.mxu0
        %1362 = vrot.lane.b32.xlu0 %v1358, 8
        %v1363 = vpop.permute.xlu0 %1362
        %vm1365 = vcmask 97344
        %1366 = vst.msk [vmem:[#allocation5] sm:$0xff] %vm1365, %v1363
        %1367 = vrot.lane.b32.xlu0 %v846, 116
        %v1368 = vpop.permute.xlu0 %1367
        %1369 = vrot.lane.b32.xlu0 %v849, 116
        %v1370 = vpop.permute.xlu0 %1369
        %v1371 = vsel %vm851, %v1368, 0
        %v1373 = vsel %vm851, %v1370, 0
        %1375 = vmatprep.subr.mxu0 0.0
        %1376 = vmatpush1.xpose.msra.mxu0 %v1373
        %1377 = vmatprep.subr.mxu0 0.0
        %1378 = vmatpush1.xpose.msra.mxu0 0.0
        %1379 = vmatprep.subr.mxu0 0.0
        %1380 = vmatpush1.xpose.msra.mxu0 0.0
        %1381 = vmatprep.subr.mxu0 0.0
        %1382 = vmatpush1.xpose.msra.mxu0 0.0
        %1383 = vmatprep.subr.mxu0 0.0
        %1384 = vmatpush1.xpose.msra.mxu0 0.0
        %1385 = vmatprep.subr.mxu0 0.0
        %1386 = vmatpush1.xpose.msra.mxu0 0.0
        %1387 = vmatprep.subr.mxu0 0.0
        %1388 = vmatpush1.xpose.msra.mxu0 0.0
        %1389 = vmatprep.subr.mxu0 0.0
        %1390 = vmatpush1.xpose.msra.mxu0 0.0
        %1391 = vmatprep.subr.mxu0 0.0
        %1392 = vmatpush1.xpose.msra.mxu0 0.0
        %1393 = vmatprep.subr.mxu0 0.0
        %1394 = vmatpush1.xpose.msra.mxu0 0.0
        %1395 = vmatprep.subr.mxu0 0.0
        %1396 = vmatpush1.xpose.msra.mxu0 0.0
        %1397 = vmatprep.subr.mxu0 0.0
        %1398 = vmatpush1.xpose.msra.mxu0 0.0
        %1399 = vmatprep.subr.mxu0 0.0
        %1400 = vmatpush1.xpose.msra.mxu0 0.0
        %1401 = vmatprep.subr.mxu0 0.0
        %1402 = vmatpush1.xpose.msra.mxu0 0.0
        %1403 = vmatprep.subr.mxu0 0.0
        %1404 = vmatpush1.xpose.msra.mxu0 0.0
        %1405 = vmatprep.subr.mxu0 0.0
        %1406 = vmatpush1.xpose.msra.mxu0 0.0
        %1407 = vmatprep.subr.mxu0 0.0
        %1408 = vmatpush1.xpose.msra.mxu0 0.0
        %1409 = vmatprep.subr.mxu0 0.0
        %1410 = vmatpush1.xpose.msra.mxu0 0.0
        %1411 = vmatprep.subr.mxu0 0.0
        %1412 = vmatpush1.xpose.msra.mxu0 0.0
        %1413 = vmatprep.subr.mxu0 0.0
        %1414 = vmatpush1.xpose.msra.mxu0 0.0
        %1415 = vmatprep.subr.mxu0 0.0
        %1416 = vmatpush1.xpose.msra.mxu0 0.0
        %1417 = vmatprep.subr.mxu0 0.0
        %1418 = vmatpush1.xpose.msra.mxu0 0.0
        %1419 = vmatprep.subr.mxu0 0.0
        %1420 = vmatpush1.xpose.msra.mxu0 0.0
        %1421 = vmatprep.subr.mxu0 0.0
        %1422 = vmatpush1.xpose.msra.mxu0 0.0
        %1423 = vmatprep.subr.mxu0 0.0
        %1424 = vmatpush1.xpose.msra.mxu0 0.0
        %1425 = vmatprep.subr.mxu0 0.0
        %1426 = vmatpush1.xpose.msra.mxu0 0.0
        %1427 = vmatprep.subr.mxu0 0.0
        %1428 = vmatpush1.xpose.msra.mxu0 0.0
        %1429 = vmatprep.subr.mxu0 0.0
        %1430 = vmatpush1.xpose.msra.mxu0 0.0
        %1431 = vmatprep.subr.mxu0 0.0
        %1432 = vmatpush1.xpose.msra.mxu0 0.0
        %1433 = vmatprep.subr.mxu0 0.0
        %1434 = vmatpush1.xpose.msra.mxu0 0.0
        %1435 = vmatprep.subr.mxu0 0.0
        %1436 = vmatpush1.xpose.msra.mxu0 0.0
        %1437 = vmatprep.subr.mxu0 0.0
        %1438 = vmatpush1.xpose.msra.mxu0 0.0
        %1439 = vmatprep.mubr.f32.mxu0 0.0
        %1440 = vmatmul.mubr.f32.gmra.mrb[0].mxu0 %v1371
        %v1441 = vpop.f32.mrb[0].mxu0
        %v1442 = vadd.f32 0.0, %v1441
        %v1443 = vpop.f32.mrb[0].mxu0
        %1444 = vdwg.mxu0
        %v1445 = vsel %vm928, %v1442, -inf
        %1446 = vmax.xlane.f32.xlu0 %v1445
        %v1447 = vpop.xlane.xlu0 %1446
        %v1448 = vsub.f32 %v1442, %v1447
        %v1449 = vmul.f32 %v1448, 1.442695
        %v1450 = vpow.pop %v1449
        %v1451 = vsel %vm928, %v1450, 0.0
        %1452 = vadd.xlane.f32.xlu0 %v1451
        %v1453 = vpop.xlane.xlu0 %1452
        %v1454 = vrcp.pop %v1453
        %v1455 = vmul.f32 %v1450, %v1454
        %s1456 = scalar_lea.vmem %s536, 24 [#allocation12]
        %1457 = vst.msk [vmem:[%s1456] sm:$0xff] %vm928, %v1442
        %s1458 = scalar_lea.vmem %s529, 24 [#allocation10]
        %1459 = vst.msk [vmem:[%s1458] sm:$0xff] %vm928, %v1455
        %1460 = vrot.lane.b32.xlu0 %v850, 116
        %v1461 = vpop.permute.xlu0 %1460
        %v1464 = vsel %vm928, %v1455, 0
        %1466 = vmatprep.subr.mxu0 0.0
        %1467 = vmatpush1.msra.mxu0 %v1461
        %1468 = vmatprep.subr.mxu0 0.0
        %1469 = vmatpush1.msra.mxu0 0.0
        %1470 = vmatprep.subr.mxu0 0.0
        %1471 = vmatpush1.msra.mxu0 0.0
        %1472 = vmatprep.subr.mxu0 0.0
        %1473 = vmatpush1.msra.mxu0 0.0
        %1474 = vmatprep.subr.mxu0 0.0
        %1475 = vmatpush1.msra.mxu0 0.0
        %1476 = vmatprep.subr.mxu0 0.0
        %1477 = vmatpush1.msra.mxu0 0.0
        %1478 = vmatprep.subr.mxu0 0.0
        %1479 = vmatpush1.msra.mxu0 0.0
        %1480 = vmatprep.subr.mxu0 0.0
        %1481 = vmatpush1.msra.mxu0 0.0
        %1482 = vmatprep.subr.mxu0 0.0
        %1483 = vmatpush1.msra.mxu0 0.0
        %1484 = vmatprep.subr.mxu0 0.0
        %1485 = vmatpush1.msra.mxu0 0.0
        %1486 = vmatprep.subr.mxu0 0.0
        %1487 = vmatpush1.msra.mxu0 0.0
        %1488 = vmatprep.subr.mxu0 0.0
        %1489 = vmatpush1.msra.mxu0 0.0
        %1490 = vmatprep.subr.mxu0 0.0
        %1491 = vmatpush1.msra.mxu0 0.0
        %1492 = vmatprep.subr.mxu0 0.0
        %1493 = vmatpush1.msra.mxu0 0.0
        %1494 = vmatprep.subr.mxu0 0.0
        %1495 = vmatpush1.msra.mxu0 0.0
        %1496 = vmatprep.subr.mxu0 0.0
        %1497 = vmatpush1.msra.mxu0 0.0
        %1498 = vmatprep.subr.mxu0 0.0
        %1499 = vmatpush1.msra.mxu0 0.0
        %1500 = vmatprep.subr.mxu0 0.0
        %1501 = vmatpush1.msra.mxu0 0.0
        %1502 = vmatprep.subr.mxu0 0.0
        %1503 = vmatpush1.msra.mxu0 0.0
        %1504 = vmatprep.subr.mxu0 0.0
        %1505 = vmatpush1.msra.mxu0 0.0
        %1506 = vmatprep.subr.mxu0 0.0
        %1507 = vmatpush1.msra.mxu0 0.0
        %1508 = vmatprep.subr.mxu0 0.0
        %1509 = vmatpush1.msra.mxu0 0.0
        %1510 = vmatprep.subr.mxu0 0.0
        %1511 = vmatpush1.msra.mxu0 0.0
        %1512 = vmatprep.subr.mxu0 0.0
        %1513 = vmatpush1.msra.mxu0 0.0
        %1514 = vmatprep.subr.mxu0 0.0
        %1515 = vmatpush1.msra.mxu0 0.0
        %1516 = vmatprep.subr.mxu0 0.0
        %1517 = vmatpush1.msra.mxu0 0.0
        %1518 = vmatprep.subr.mxu0 0.0
        %1519 = vmatpush1.msra.mxu0 0.0
        %1520 = vmatprep.subr.mxu0 0.0
        %1521 = vmatpush1.msra.mxu0 0.0
        %1522 = vmatprep.subr.mxu0 0.0
        %1523 = vmatpush1.msra.mxu0 0.0
        %1524 = vmatprep.subr.mxu0 0.0
        %1525 = vmatpush1.msra.mxu0 0.0
        %1526 = vmatprep.subr.mxu0 0.0
        %1527 = vmatpush1.msra.mxu0 0.0
        %1528 = vmatprep.subr.mxu0 0.0
        %1529 = vmatpush1.msra.mxu0 0.0
        %1530 = vmatprep.mubr.f32.mxu0 0.0
        %1531 = vmatmul.mubr.f32.gmra.mrb[0].mxu0 %v1464
        %v1532 = vpop.f32.mrb[0].mxu0
        %v1533 = vadd.f32 0.0, %v1532
        %v1534 = vpop.f32.mrb[0].mxu0
        %1535 = vdwg.mxu0
        %1537 = vrot.lane.b32.xlu0 %v1533, 12
        %v1538 = vpop.permute.xlu0 %1537
        %vm1540 = vcmask 130144
        %1541 = vst.msk [vmem:[#allocation5] sm:$0xff] %vm1540, %v1538
        %v1542 = vld [vmem:[#allocation5] sm:$0xff]
        %v1543 = vld [vmem:[#allocation6] sm:$0xff]
        %v1544 = vld [vmem:[#allocation6 + $0x8] sm:$0xff]
        %v1545 = vld [vmem:[%s12] sm:$0x1]
        %v1547 = vlaneseq
        %v1548 = vshrl.u32 %v1547, 7
        %v1549 = vsub.s32 0, %v1548
        %v1550 = vrot.slane %v1545, %v1549
        %v1553 = vsel %vm775, %v1542, 0
        %1555 = vmatprep.subr.mxu0 0.0
        %1556 = vmatpush1.msra.mxu0 %v1543
        %1557 = vmatprep.subr.mxu0 0.0
        %1558 = vmatpush1.msra.mxu0 %v1544
        %1559 = vmatprep.subr.mxu0 0.0
        %1560 = vmatpush1.msra.mxu0 0.0
        %1561 = vmatprep.subr.mxu0 0.0
        %1562 = vmatpush1.msra.mxu0 0.0
        %1563 = vmatprep.subr.mxu0 0.0
        %1564 = vmatpush1.msra.mxu0 0.0
        %1565 = vmatprep.subr.mxu0 0.0
        %1566 = vmatpush1.msra.mxu0 0.0
        %1567 = vmatprep.subr.mxu0 0.0
        %1568 = vmatpush1.msra.mxu0 0.0
        %1569 = vmatprep.subr.mxu0 0.0
        %1570 = vmatpush1.msra.mxu0 0.0
        %1571 = vmatprep.subr.mxu0 0.0
        %1572 = vmatpush1.msra.mxu0 0.0
        %1573 = vmatprep.subr.mxu0 0.0
        %1574 = vmatpush1.msra.mxu0 0.0
        %1575 = vmatprep.subr.mxu0 0.0
        %1576 = vmatpush1.msra.mxu0 0.0
        %1577 = vmatprep.subr.mxu0 0.0
        %1578 = vmatpush1.msra.mxu0 0.0
        %1579 = vmatprep.subr.mxu0 0.0
        %1580 = vmatpush1.msra.mxu0 0.0
        %1581 = vmatprep.subr.mxu0 0.0
        %1582 = vmatpush1.msra.mxu0 0.0
        %1583 = vmatprep.subr.mxu0 0.0
        %1584 = vmatpush1.msra.mxu0 0.0
        %1585 = vmatprep.subr.mxu0 0.0
        %1586 = vmatpush1.msra.mxu0 0.0
        %1587 = vmatprep.subr.mxu0 0.0
        %1588 = vmatpush1.msra.mxu0 0.0
        %1589 = vmatprep.subr.mxu0 0.0
        %1590 = vmatpush1.msra.mxu0 0.0
        %1591 = vmatprep.subr.mxu0 0.0
        %1592 = vmatpush1.msra.mxu0 0.0
        %1593 = vmatprep.subr.mxu0 0.0
        %1594 = vmatpush1.msra.mxu0 0.0
        %1595 = vmatprep.subr.mxu0 0.0
        %1596 = vmatpush1.msra.mxu0 0.0
        %1597 = vmatprep.subr.mxu0 0.0
        %1598 = vmatpush1.msra.mxu0 0.0
        %1599 = vmatprep.subr.mxu0 0.0
        %1600 = vmatpush1.msra.mxu0 0.0
        %1601 = vmatprep.subr.mxu0 0.0
        %1602 = vmatpush1.msra.mxu0 0.0
        %1603 = vmatprep.subr.mxu0 0.0
        %1604 = vmatpush1.msra.mxu0 0.0
        %1605 = vmatprep.subr.mxu0 0.0
        %1606 = vmatpush1.msra.mxu0 0.0
        %1607 = vmatprep.subr.mxu0 0.0
        %1608 = vmatpush1.msra.mxu0 0.0
        %1609 = vmatprep.subr.mxu0 0.0
        %1610 = vmatpush1.msra.mxu0 0.0
        %1611 = vmatprep.subr.mxu0 0.0
        %1612 = vmatpush1.msra.mxu0 0.0
        %1613 = vmatprep.subr.mxu0 0.0
        %1614 = vmatpush1.msra.mxu0 0.0
        %1615 = vmatprep.subr.mxu0 0.0
        %1616 = vmatpush1.msra.mxu0 0.0
        %1617 = vmatprep.subr.mxu0 0.0
        %1618 = vmatpush1.msra.mxu0 0.0
        %1619 = vmatprep.mubr.f32.mxu0 0.0
        %1620 = vmatmul.mubr.f32.gmra.mrb[0].mxu0 %v1553
        %v1621 = vpop.f32.mrb[0].mxu0
        %v1622 = vadd.f32 %v1550, %v1621
        %v1623 = vpop.f32.mrb[0].mxu0
        %1624 = vdwg.mxu0
        %1625 = vst.msk [vmem:[%s522] sm:$0xff] %vm775, %v1622
        %s1626 = sand.u32 %s334, 1
        %s1627 = scalar_lea.sflag [#allocation8], %s1626
        %s1628 = sand.u32 %s334, 1
        %s1629 = smul.addr %s1628, 8
        %s1630 = scalar_lea.vmem [#allocation9], %s1629
        %s1631 = sand.u32 %s34, 1
        %s1632 = scalar_lea.sflag [#allocation11], %s1631
        %s1633 = sand.u32 %s362, 1
        %s1634 = smul.addr %s1633, 32
        %s1635 = scalar_lea.vmem [#allocation10], %s1634
        %s1636 = sand.u32 %s34, 1
        %s1637 = scalar_lea.sflag [#allocation11], %s1636
        %s1638 = sand.u32 %s390, 1
        %s1639 = smul.addr %s1638, 32
        %s1640 = scalar_lea.vmem [#allocation12], %s1639
        // Predicated region
        $region88: #{graformer_mha.1} parent=71 // pred_check
          %p1641 = pneg %p344
        $region89: #{graformer_mha.1} parent=71 // pred_check_branch
          %1643 = sbr.rel (%p1641) target = $region91
        $region90: #{graformer_mha.1} parent=71 // pred_region
          %s1645 = ssub.s32 128, 128
          %1646 = vsyncadd %s1627, %s1645
          %s1647 = sadd.s32 %s39, %s38
          %s1648 = smul.addr %s1647, 128
          %s1649 = scalar_lea.hbm %s13, %s1648
          %s1651 = sshll.u32 %s1630, 4
          %s1652 = int_to_ptr.vmem [resolvable:$true] %s1651
          %1654 = dma.vmem_to_hbm [thread:$0]  %s1652, 128, %s1649, %s1627
        $region91: #{graformer_mha.1} parent=71 // pred_fallthru
          _
        // Predicated region
        $region92: #{graformer_mha.1} parent=71 // pred_check
          %p1655 = pneg %p372
        $region93: #{graformer_mha.1} parent=71 // pred_check_branch
          %1657 = sbr.rel (%p1655) target = $region95
        $region94: #{graformer_mha.1} parent=71 // pred_region
          %s1659 = ssub.s32 512, 512
          %1660 = vsyncadd %s1632, %s1659
          %s1661 = smul.addr %s38, 4
          %s1662 = sadd.s32 %s39, %s1661
          %s1663 = smul.addr %s1662, 128
          %s1664 = scalar_lea.hbm %s14, %s1663
          %s1665 = sshll.u32 %s1635, 4
          %s1666 = int_to_ptr.vmem [resolvable:$true] %s1665
          %1671 = dma.vmem_to_hbm [thread:$0]  %s1666, 512, %s1664, %s1632, 128, 128, 8
        $region95: #{graformer_mha.1} parent=71 // pred_fallthru
          _
        // Predicated region
        $region96: #{graformer_mha.1} parent=71 // pred_check
          %p1672 = pneg %p400
        $region97: #{graformer_mha.1} parent=71 // pred_check_branch
          %1674 = sbr.rel (%p1672) target = $region99
        $region98: #{graformer_mha.1} parent=71 // pred_region
          %s1676 = ssub.s32 512, 512
          %1677 = vsyncadd %s1637, %s1676
          %s1678 = smul.addr %s38, 4
          %s1679 = sadd.s32 %s39, %s1678
          %s1680 = smul.addr %s1679, 128
          %s1681 = scalar_lea.hbm %s15, %s1680
          %s1682 = sshll.u32 %s1640, 4
          %s1683 = int_to_ptr.vmem [resolvable:$true] %s1682
          %1688 = dma.vmem_to_hbm [thread:$0]  %s1683, 512, %s1681, %s1637, 128, 128, 8
        $region99: #{graformer_mha.1} parent=71 // pred_fallthru
          _
      $region72: #{graformer_mha.1} parent=5 // pred_fallthru
        _
      %p1689 = scmp.le.s32.totalorder 2, %s29
      // Predicated region
      $region100: #{graformer_mha.1} parent=5 // pred_check
        %p1690 = pneg %p1689
      $region101: #{graformer_mha.1} parent=5 // pred_check_branch
        %1692 = sbr.rel (%p1690) target = $region103
      $region102: #{graformer_mha.1} parent=5 // pred_region
        %s1693 = ssub.s32 %s29, 2
        // Predicated region
        $region104: #{graformer_mha.1} parent=102 // pred_check
          %p1694 = pneg %p350
        $region105: #{graformer_mha.1} parent=102 // pred_check_branch
          %1696 = sbr.rel (%p1694) target = $region107
        $region106: #{graformer_mha.1} parent=102 // pred_region
          %s1697 = sand.u32 %s335, 1
          %s1698 = scalar_lea.sflag [#allocation8], %s1697
          %s1699 = sand.u32 %s335, 1
          %s1700 = smul.addr %s1699, 8
          %s1701 = scalar_lea.vmem [#allocation9], %s1700
          %1702 = dma.done %s1698, 128
        $region107: #{graformer_mha.1} parent=102 // pred_fallthru
          _
        // Predicated region
        $region108: #{graformer_mha.1} parent=102 // pred_check
          %p1703 = pneg %p378
        $region109: #{graformer_mha.1} parent=102 // pred_check_branch
          %1705 = sbr.rel (%p1703) target = $region111
        $region110: #{graformer_mha.1} parent=102 // pred_region
          %s1706 = sand.u32 %s35, 1
          %s1707 = scalar_lea.sflag [#allocation11], %s1706
          %s1708 = sand.u32 %s363, 1
          %s1709 = smul.addr %s1708, 32
          %s1710 = scalar_lea.vmem [#allocation10], %s1709
          %1711 = dma.done %s1707, 512
        $region111: #{graformer_mha.1} parent=102 // pred_fallthru
          _
        // Predicated region
        $region112: #{graformer_mha.1} parent=102 // pred_check
          %p1712 = pneg %p406
        $region113: #{graformer_mha.1} parent=102 // pred_check_branch
          %1714 = sbr.rel (%p1712) target = $region115
        $region114: #{graformer_mha.1} parent=102 // pred_region
          %s1715 = sand.u32 %s35, 1
          %s1716 = scalar_lea.sflag [#allocation11], %s1715
          %s1717 = sand.u32 %s391, 1
          %s1718 = smul.addr %s1717, 32
          %s1719 = scalar_lea.vmem [#allocation12], %s1718
          %1720 = dma.done %s1716, 512
        $region115: #{graformer_mha.1} parent=102 // pred_fallthru
          _
      $region103: #{graformer_mha.1} parent=5 // pred_fallthru
        _
    $region6: #{graformer_mha.1} parent=1 // loop_footer
      %s33 = sadd.s32 1, %s29
    $region7: #{graformer_mha.1} parent=1 // loop_footer_branch
      %28 = sbr.rel target = $region3
    $region8: #{graformer_mha.1} parent=1 // loop_exit
      _
    %1721 = vsyncpa [#allocation7], 1
    %s1722 = scalar_lea.sflag [#allocation7], 1
    %1723 = vsyncpa %s1722, 1
    %1724 = vsyncpa [#allocation8], 1
    %s1725 = scalar_lea.sflag [#allocation8], 1
    %1726 = vsyncpa %s1725, 1
    %1727 = vsyncpa [#allocation11], 1
    %s1728 = scalar_lea.sflag [#allocation11], 1
    %1729 = vsyncpa %s1728, 1

</llo_original>
